<compile_context>
chip_gen: v7x
topology: tpu7x:2x2x1
jax: 0.10.0
libtpu: 0.0.40
codegen_flags: <defaults>
</compile_context>

<pallas_src>
import functools

import numpy as np
import jax
import jax.numpy as jnp
from jax.experimental import pallas as pl
from jax.experimental.pallas import tpu as pltpu


def _spearman_kernel(rows_ref, cols_ref, o_ref, *, eps, n):
    """One (dists, ratings) pair -> scalar loss 1 - rho.

    rows_ref: (2, N)  VMEM; row 0 = dists, row 1 = ratings (N on lanes).
    cols_ref: (2N, 1) VMEM; [0:N] = dists, [N:2N] = ratings (N on sublanes),
              i.e. pre-transposed copies built for free in the wrapper.
    o_ref:    (1, 1)  VMEM; the loss.
    """
    f32 = jnp.float32
    neg_inf = f32(-jnp.inf)
    pos_inf = f32(jnp.inf)

    d_row = rows_ref[0:1, :]            # (1, N)
    r_row = rows_ref[1:2, :]            # (1, N)
    d_col = cols_ref[0:n, :]            # (N, 1)
    r_col = cols_ref[n:2 * n, :]        # (N, 1)

    ii = jax.lax.broadcasted_iota(jnp.int32, (n, n), 0)      # sublane (row) index
    jj = jax.lax.broadcasted_iota(jnp.int32, (n, n), 1)      # lane (col) index
    sub_i = jax.lax.broadcasted_iota(jnp.int32, (n, 1), 0)   # (N, 1): 0..N-1
    a_f = sub_i.astype(f32)
    n_f = f32(n)

    # ---- hard ranks of ratings (scipy.stats.rankdata, method='average') ----
    # rank_i = #less + (#eq + 1)/2, fused into a single lane reduction.
    rank_R = jnp.sum((r_row < r_col).astype(f32) + 0.5 * (r_row == r_col).astype(f32),
                     axis=1, keepdims=True) + f32(0.5)                 # (N, 1)

    # ---- soft rank of dists (fast_soft_sort, 'l2', ascending) ----
    # TODO(synk): only the default 'l2' regularization is implemented; 'kl'/'log_kl'
    # variants of soft_rank use a different projection.
    # 0-based position of every element in DESCENDING value order (stable ties),
    # computed in both layouts so no in-kernel transpose is ever needed.
    pos_col = jnp.sum(((d_row > d_col) | ((d_row == d_col) & (jj < ii))).astype(f32),
                      axis=1, keepdims=True)      # (N, 1): pos of element i (i on sublanes)
    pos_row = jnp.sum(((d_col > d_row) | ((d_col == d_row) & (ii < jj))).astype(f32),
                      axis=0, keepdims=True)      # (1, N): pos of element i (i on lanes)

    inv_eps = f32(1.0 / eps)
    theta_col = d_col * inv_eps
    theta_row = d_row * inv_eps

    # y[q] = s[q] - w[q], s = theta sorted descending, w = [N, N-1, ..., 1].
    # Exclusive prefix  epref[a] = sum_{q<a} y[q]  (a on sublanes), built transpose-free
    # with one masked reduce; the w part has a closed form in the iota.
    S_lt_col = jnp.sum(jnp.where(pos_row < a_f, theta_row, f32(0.0)),
                       axis=1, keepdims=True)                          # (N, 1)
    epref_col = S_lt_col - (a_f * n_f - 0.5 * a_f * (a_f - 1.0))       # (N, 1)

    # Non-increasing isotonic regression via the min-max formula:
    #   dual[p] = min_{a<=p} max_{b>=p} mean(y[a..b])
    # Running suffix-max over columns p = N-1 .. 0; every step works on (N,1)/(1,1)
    # only.  The segment-mean column M[a, p] = (pref[p] - epref[a]) / (p - a + 1) is
    # rebuilt from the closed form (no (N,N) matrix, no value slicing).
    suf = jnp.full((n, 1), neg_inf, f32)           # suf[a] = max_{b>=p} M[a, b]
    dual_at_pos = jnp.zeros((n, 1), f32)           # dual[pos_i], scattered per element i
    for p in range(n - 1, -1, -1):
        p_f = f32(p)
        # Inclusive prefix pref[p] = sum_{q<=p} y[q]; theta part via a masked reduce,
        # w part is a Python-time constant.
        S_le_p = jnp.sum(jnp.where(pos_col <= p_f, theta_col, f32(0.0)),
                         axis=0, keepdims=True)                        # (1, 1)
        pref_p = S_le_p - f32((p + 1) * n - 0.5 * p * (p + 1))
        seg_len = jnp.maximum(p_f - a_f + 1.0, f32(1.0))               # guard a > p
        col_p = jnp.where(sub_i <= p, (pref_p - epref_col) / seg_len, neg_inf)
        suf = jnp.maximum(suf, col_p)
        d_p = jnp.min(jnp.where(sub_i <= p, suf, pos_inf),
                      axis=0, keepdims=True)                           # (1, 1)
        dual_at_pos = jnp.where(pos_col == p_f, d_p, dual_at_pos)

    # Soft rank of element i:  primal[pos_i] = s[pos_i] - dual[pos_i] = theta[i] - dual[pos_i]
    soft_col = theta_col - dual_at_pos                                 # (N, 1)

    # ---- Spearman correlation (Pearson of soft ranks vs hard ranks) ----
    inv_n = f32(1.0 / n)
    vD = soft_col - jnp.sum(soft_col, axis=0, keepdims=True) * inv_n
    vR = rank_R - jnp.sum(rank_R, axis=0, keepdims=True) * inv_n
    num = jnp.sum(vD * vR, axis=0, keepdims=True)
    den2 = (jnp.sum(vD * vD, axis=0, keepdims=True)
            * jnp.sum(vR * vR, axis=0, keepdims=True))
    rho = num * jax.lax.rsqrt(den2 + f32(1e-30))   # EUP rsqrt, guarded against den==0
    o_ref[...] = f32(1.0) - rho


def spearmans_rank_loss_batched(dists, ratings, regularization_strength=0.1):
    """Batched soft-Spearman loss: dists, ratings of shape (B, N) -> (B,) losses."""
    dists = jnp.asarray(dists, jnp.float32)
    ratings = jnp.asarray(ratings, jnp.float32)
    if dists.ndim == 1:
        dists, ratings = dists[None, :], ratings[None, :]
    B, n = dists.shape

    # Fused inputs, pre-transposed in the wrapper (free layout plumbing in XLA):
    rows = jnp.stack([dists, ratings], axis=1)                      # (B, 2, N)
    cols = jnp.concatenate([dists, ratings], axis=1)[:, :, None]    # (B, 2N, 1)

    kernel = functools.partial(_spearman_kernel,
                               eps=float(regularization_strength), n=n)
    out = pl.pallas_call(
        kernel,
        out_shape=jax.ShapeDtypeStruct((B, 1), jnp.float32),
        grid=(B,),
        in_specs=[pl.BlockSpec((None, 2, n), lambda b: (b, 0, 0)),
                  pl.BlockSpec((None, 2 * n, 1), lambda b: (b, 0, 0))],
        out_specs=pl.BlockSpec((1, 1), lambda b: (b, 0)),
        compiler_params=pltpu.CompilerParams(dimension_semantics=("parallel",)),
    )(rows, cols)
    return out[:, 0]


def spearmans_rank_loss(dists, ratings, regularization_strength=0.1):
    """1 - soft Spearman's rho between dists (soft-ranked) and ratings (hard-ranked)."""
    d = jnp.asarray(dists, jnp.float32).reshape(1, -1)
    r = jnp.asarray(ratings, jnp.float32).reshape(1, -1)
    return spearmans_rank_loss_batched(d, r, regularization_strength)[0]


# ----------------------------- pure-numpy reference -----------------------------
def _rankdata_avg(x):
    x = np.asarray(x, dtype=np.float64)
    return np.array([np.sum(x < xi) + 0.5 * (np.sum(x == xi) + 1.0) for xi in x])


def _isotonic_nonincreasing(y):
    # argmin_{v1>=...>=vn} 0.5||v - y||^2 via pool-adjacent-violators
    vals, wts = [], []
    for yi in np.asarray(y, dtype=np.float64):
        vals.append(float(yi)); wts.append(1.0)
        while len(vals) > 1 and vals[-2] < vals[-1]:
            v2, w2 = vals.pop(), wts.pop()
            v1, w1 = vals.pop(), wts.pop()
            vals.append((v1 * w1 + v2 * w2) / (w1 + w2))
            wts.append(w1 + w2)
    out = []
    for v, w in zip(vals, wts):
        out.extend([v] * int(round(w)))
    return np.array(out)


def _soft_rank_ref(values, eps):
    n = len(values)
    theta = np.asarray(values, dtype=np.float64) / eps
    perm = np.argsort(-theta, kind="stable")
    s = theta[perm]
    w = np.arange(n, 0, -1).astype(np.float64)
    dual = _isotonic_nonincreasing(s - w)
    primal = s - dual
    out = np.empty(n)
    out[perm] = primal
    return out


def _ref_loss(dists, ratings, eps):
    sd = _soft_rank_ref(np.asarray(dists, np.float64), eps)
    rr = _rankdata_avg(ratings)
    vD = sd - sd.mean()
    vR = rr - rr.mean()
    rho = np.sum(vD * vR) / (np.sqrt(np.sum(vD ** 2)) * np.sqrt(np.sum(vR ** 2)))
    return 1.0 - rho


if __name__ == "__main__":
    key = jax.random.PRNGKey(0)
    kd, kr = jax.random.split(key)
    N = 16                                    # input shape: dists (N,), ratings (N,)
    dists = jax.random.uniform(kd, (N,), dtype=jnp.float32)
    ratings = jax.random.uniform(kr, (N,), dtype=jnp.float32) * 4.0 + 1.0

    # single-pair path (matches the PyTorch module API)
    loss = spearmans_rank_loss(dists, ratings, regularization_strength=0.1)
    loss = jax.block_until_ready(loss)
    ref = _ref_loss(np.asarray(dists), np.asarray(ratings), 0.1)
    assert np.isfinite(float(loss))
    np.testing.assert_allclose(float(loss), float(ref), rtol=1e-3, atol=1e-3)

    # batched path (grid over B, marked "parallel" so v7x's 2nd TensorCore is used)
    B = 4
    kb1, kb2 = jax.random.split(jax.random.PRNGKey(1))
    d_b = jax.random.uniform(kb1, (B, N), dtype=jnp.float32)
    r_b = jax.random.uniform(kb2, (B, N), dtype=jnp.float32) * 4.0 + 1.0
    losses = jax.block_until_ready(
        spearmans_rank_loss_batched(d_b, r_b, regularization_strength=0.1))
    refs = np.array([_ref_loss(np.asarray(d_b[i]), np.asarray(r_b[i]), 0.1)
                     for i in range(B)])
    np.testing.assert_allclose(np.asarray(losses), refs, rtol=1e-3, atol=1e-3)

    print("KERNEL_OK")
</pallas_src>

<mosaic_0001>
module attributes {stable_mosaic.version = 11 : i64} {
  func.func @_spearman_kernel(%arg0: i32, %arg1: memref<1x2x16xf32, #tpu.memory_space<vmem>>, %arg2: memref<1x32x1xf32, #tpu.memory_space<vmem>>, %arg3: memref<1x1xf32, #tpu.memory_space<vmem>>) attributes {dimension_semantics = [#tpu.dimension_semantics<parallel>], iteration_bounds = array<i64: 1>, scalar_prefetch = 0 : i64, scratch_operands = 0 : i64, tpu.core_type = #tpu.core_type<tc>, window_params = [{transform_indices = @transform_0, window_bounds = array<i64: 1, 2, 16>}, {transform_indices = @transform_1, window_bounds = array<i64: 1, 32, 1>}, {transform_indices = @transform_2, window_bounds = array<i64: 1, 1>}]} {
    %c0 = arith.constant 0 : index
    %c0_0 = arith.constant 0 : index
    %c0_1 = arith.constant 0 : index
    %0 = vector.load %arg1[%c0, %c0_0, %c0_1] : memref<1x2x16xf32, #tpu.memory_space<vmem>>, vector<1x1x16xf32>
    %1 = vector.shape_cast %0 : vector<1x1x16xf32> to vector<1x16xf32>
    %c0_2 = arith.constant 0 : index
    %c1 = arith.constant 1 : index
    %c0_3 = arith.constant 0 : index
    %2 = vector.load %arg1[%c0_2, %c1, %c0_3] : memref<1x2x16xf32, #tpu.memory_space<vmem>>, vector<1x1x16xf32>
    %3 = vector.shape_cast %2 : vector<1x1x16xf32> to vector<1x16xf32>
    %c0_4 = arith.constant 0 : index
    %c0_5 = arith.constant 0 : index
    %c0_6 = arith.constant 0 : index
    %4 = vector.load %arg2[%c0_4, %c0_5, %c0_6] : memref<1x32x1xf32, #tpu.memory_space<vmem>>, vector<1x16x1xf32>
    %5 = vector.shape_cast %4 : vector<1x16x1xf32> to vector<16x1xf32>
    %c0_7 = arith.constant 0 : index
    %c16 = arith.constant 16 : index
    %c0_8 = arith.constant 0 : index
    %6 = vector.load %arg2[%c0_7, %c16, %c0_8] : memref<1x32x1xf32, #tpu.memory_space<vmem>>, vector<1x16x1xf32>
    %7 = vector.shape_cast %6 : vector<1x16x1xf32> to vector<16x1xf32>
    %8 = tpu.iota {dimensions = array<i32: 0>} : vector<16x16xi32>
    %9 = tpu.iota {dimensions = array<i32: 1>} : vector<16x16xi32>
    %10 = tpu.iota {dimensions = array<i32: 0>} : vector<16x1xi32>
    %11 = arith.sitofp %10 : vector<16x1xi32> to vector<16x1xf32>
    %12 = vector.broadcast %3 : vector<1x16xf32> to vector<16x16xf32>
    %13 = vector.broadcast %7 : vector<16x1xf32> to vector<16x16xf32>
    %14 = arith.cmpf olt, %12, %13 : vector<16x16xf32>
    %15 = arith.extui %14 : vector<16x16xi1> to vector<16x16xi32>
    %16 = arith.sitofp %15 : vector<16x16xi32> to vector<16x16xf32>
    %17 = vector.broadcast %3 : vector<1x16xf32> to vector<16x16xf32>
    %18 = vector.broadcast %7 : vector<16x1xf32> to vector<16x16xf32>
    %19 = arith.cmpf oeq, %17, %18 : vector<16x16xf32>
    %20 = arith.extui %19 : vector<16x16xi1> to vector<16x16xi32>
    %21 = arith.sitofp %20 : vector<16x16xi32> to vector<16x16xf32>
    %cst = arith.constant 5.000000e-01 : f32
    %22 = vector.broadcast %cst : f32 to vector<16x16xf32>
    %23 = arith.mulf %22, %21 : vector<16x16xf32>
    %24 = arith.addf %16, %23 : vector<16x16xf32>
    %cst_9 = arith.constant dense<0.000000e+00> : vector<16xf32>
    %25 = vector.multi_reduction <add>, %24, %cst_9 [1] : vector<16x16xf32> to vector<16xf32>
    %26 = vector.shape_cast %25 : vector<16xf32> to vector<16x1xf32>
    %cst_10 = arith.constant 5.000000e-01 : f32
    %27 = vector.broadcast %cst_10 : f32 to vector<16x1xf32>
    %28 = arith.addf %26, %27 : vector<16x1xf32>
    %29 = vector.broadcast %1 : vector<1x16xf32> to vector<16x16xf32>
    %30 = vector.broadcast %5 : vector<16x1xf32> to vector<16x16xf32>
    %31 = arith.cmpf ogt, %29, %30 : vector<16x16xf32>
    %32 = vector.broadcast %1 : vector<1x16xf32> to vector<16x16xf32>
    %33 = vector.broadcast %5 : vector<16x1xf32> to vector<16x16xf32>
    %34 = arith.cmpf oeq, %32, %33 : vector<16x16xf32>
    %35 = arith.cmpi slt, %9, %8 : vector<16x16xi32>
    %36 = arith.andi %34, %35 : vector<16x16xi1>
    %37 = arith.ori %31, %36 : vector<16x16xi1>
    %38 = arith.extui %37 : vector<16x16xi1> to vector<16x16xi32>
    %39 = arith.sitofp %38 : vector<16x16xi32> to vector<16x16xf32>
    %cst_11 = arith.constant dense<0.000000e+00> : vector<16xf32>
    %40 = vector.multi_reduction <add>, %39, %cst_11 [1] : vector<16x16xf32> to vector<16xf32>
    %41 = vector.shape_cast %40 : vector<16xf32> to vector<16x1xf32>
    %42 = vector.broadcast %5 : vector<16x1xf32> to vector<16x16xf32>
    %43 = vector.broadcast %1 : vector<1x16xf32> to vector<16x16xf32>
    %44 = arith.cmpf ogt, %42, %43 : vector<16x16xf32>
    %45 = vector.broadcast %5 : vector<16x1xf32> to vector<16x16xf32>
    %46 = vector.broadcast %1 : vector<1x16xf32> to vector<16x16xf32>
    %47 = arith.cmpf oeq, %45, %46 : vector<16x16xf32>
    %48 = arith.cmpi slt, %8, %9 : vector<16x16xi32>
    %49 = arith.andi %47, %48 : vector<16x16xi1>
    %50 = arith.ori %44, %49 : vector<16x16xi1>
    %51 = arith.extui %50 : vector<16x16xi1> to vector<16x16xi32>
    %52 = arith.sitofp %51 : vector<16x16xi32> to vector<16x16xf32>
    %cst_12 = arith.constant dense<0.000000e+00> : vector<16xf32>
    %53 = vector.multi_reduction <add>, %52, %cst_12 [0] : vector<16x16xf32> to vector<16xf32>
    %54 = vector.shape_cast %53 : vector<16xf32> to vector<1x16xf32>
    %cst_13 = arith.constant 1.000000e+01 : f32
    %55 = vector.broadcast %cst_13 : f32 to vector<16x1xf32>
    %56 = arith.mulf %5, %55 : vector<16x1xf32>
    %cst_14 = arith.constant 1.000000e+01 : f32
    %57 = vector.broadcast %cst_14 : f32 to vector<1x16xf32>
    %58 = arith.mulf %1, %57 : vector<1x16xf32>
    %59 = vector.broadcast %54 : vector<1x16xf32> to vector<16x16xf32>
    %60 = vector.broadcast %11 : vector<16x1xf32> to vector<16x16xf32>
    %61 = arith.cmpf olt, %59, %60 : vector<16x16xf32>
    %cst_15 = arith.constant 0.000000e+00 : f32
    %62 = vector.shape_cast %58 : vector<1x16xf32> to vector<1x16xf32>
    %63 = vector.broadcast %62 : vector<1x16xf32> to vector<16x16xf32>
    %64 = vector.broadcast %cst_15 : f32 to vector<16x16xf32>
    %65 = arith.select %61, %63, %64 : vector<16x16xi1>, vector<16x16xf32>
    %cst_16 = arith.constant dense<0.000000e+00> : vector<16xf32>
    %66 = vector.multi_reduction <add>, %65, %cst_16 [1] : vector<16x16xf32> to vector<16xf32>
    %67 = vector.shape_cast %66 : vector<16xf32> to vector<16x1xf32>
    %cst_17 = arith.constant 1.600000e+01 : f32
    %68 = vector.broadcast %cst_17 : f32 to vector<16x1xf32>
    %69 = arith.mulf %11, %68 : vector<16x1xf32>
    %cst_18 = arith.constant 5.000000e-01 : f32
    %70 = vector.broadcast %cst_18 : f32 to vector<16x1xf32>
    %71 = arith.mulf %70, %11 : vector<16x1xf32>
    %cst_19 = arith.constant 1.000000e+00 : f32
    %72 = vector.broadcast %cst_19 : f32 to vector<16x1xf32>
    %73 = arith.subf %11, %72 : vector<16x1xf32>
    %74 = arith.mulf %71, %73 : vector<16x1xf32>
    %75 = arith.subf %69, %74 : vector<16x1xf32>
    %76 = arith.subf %67, %75 : vector<16x1xf32>
    %cst_20 = arith.constant 0xFF800000 : f32
    %77 = vector.broadcast %cst_20 : f32 to vector<16x1xf32>
    %cst_21 = arith.constant 0.000000e+00 : f32
    %78 = vector.broadcast %cst_21 : f32 to vector<16x1xf32>
    %cst_22 = arith.constant 1.500000e+01 : f32
    %79 = vector.broadcast %cst_22 : f32 to vector<16x1xf32>
    %80 = arith.cmpf ole, %41, %79 : vector<16x1xf32>
    %cst_23 = arith.constant 0.000000e+00 : f32
    %81 = vector.broadcast %cst_23 : f32 to vector<16x1xf32>
    %82 = arith.select %80, %56, %81 : vector<16x1xi1>, vector<16x1xf32>
    %cst_24 = arith.constant dense<0.000000e+00> : vector<1xf32>
    %83 = vector.multi_reduction <add>, %82, %cst_24 [0] : vector<16x1xf32> to vector<1xf32>
    %84 = vector.shape_cast %83 : vector<1xf32> to vector<1x1xf32>
    %cst_25 = arith.constant 1.360000e+02 : f32
    %85 = vector.broadcast %cst_25 : f32 to vector<1x1xf32>
    %86 = arith.subf %84, %85 : vector<1x1xf32>
    %cst_26 = arith.constant 1.500000e+01 : f32
    %87 = vector.broadcast %cst_26 : f32 to vector<16x1xf32>
    %88 = arith.subf %87, %11 : vector<16x1xf32>
    %cst_27 = arith.constant 1.000000e+00 : f32
    %89 = vector.broadcast %cst_27 : f32 to vector<16x1xf32>
    %90 = arith.addf %88, %89 : vector<16x1xf32>
    %cst_28 = arith.constant 1.000000e+00 : f32
    %91 = vector.broadcast %cst_28 : f32 to vector<16x1xf32>
    %92 = arith.maximumf %90, %91 : vector<16x1xf32>
    %c15_i32 = arith.constant 15 : i32
    %93 = vector.broadcast %c15_i32 : i32 to vector<16x1xi32>
    %94 = arith.cmpi sle, %10, %93 : vector<16x1xi32>
    %95 = vector.broadcast %86 : vector<1x1xf32> to vector<16x1xf32>
    %96 = arith.subf %95, %76 : vector<16x1xf32>
    %97 = arith.divf %96, %92 : vector<16x1xf32>
    %cst_29 = arith.constant 0xFF800000 : f32
    %98 = vector.broadcast %cst_29 : f32 to vector<16x1xf32>
    %99 = arith.select %94, %97, %98 : vector<16x1xi1>, vector<16x1xf32>
    %100 = arith.maximumf %77, %99 : vector<16x1xf32>
    %c15_i32_30 = arith.constant 15 : i32
    %101 = vector.broadcast %c15_i32_30 : i32 to vector<16x1xi32>
    %102 = arith.cmpi sle, %10, %101 : vector<16x1xi32>
    %cst_31 = arith.constant 0x7F800000 : f32
    %103 = vector.broadcast %cst_31 : f32 to vector<16x1xf32>
    %104 = arith.select %102, %100, %103 : vector<16x1xi1>, vector<16x1xf32>
    %cst_32 = arith.constant dense<0x7F800000> : vector<1xf32>
    %105 = vector.multi_reduction <minimumf>, %104, %cst_32 [0] : vector<16x1xf32> to vector<1xf32>
    %106 = vector.shape_cast %105 : vector<1xf32> to vector<1x1xf32>
    %cst_33 = arith.constant 1.500000e+01 : f32
    %107 = vector.broadcast %cst_33 : f32 to vector<16x1xf32>
    %108 = arith.cmpf oeq, %41, %107 : vector<16x1xf32>
    %109 = vector.shape_cast %106 : vector<1x1xf32> to vector<1x1xf32>
    %110 = vector.broadcast %109 : vector<1x1xf32> to vector<16x1xf32>
    %111 = arith.select %108, %110, %78 : vector<16x1xi1>, vector<16x1xf32>
    %cst_34 = arith.constant 1.400000e+01 : f32
    %112 = vector.broadcast %cst_34 : f32 to vector<16x1xf32>
    %113 = arith.cmpf ole, %41, %112 : vector<16x1xf32>
    %cst_35 = arith.constant 0.000000e+00 : f32
    %114 = vector.broadcast %cst_35 : f32 to vector<16x1xf32>
    %115 = arith.select %113, %56, %114 : vector<16x1xi1>, vector<16x1xf32>
    %cst_36 = arith.constant dense<0.000000e+00> : vector<1xf32>
    %116 = vector.multi_reduction <add>, %115, %cst_36 [0] : vector<16x1xf32> to vector<1xf32>
    %117 = vector.shape_cast %116 : vector<1xf32> to vector<1x1xf32>
    %cst_37 = arith.constant 1.350000e+02 : f32
    %118 = vector.broadcast %cst_37 : f32 to vector<1x1xf32>
    %119 = arith.subf %117, %118 : vector<1x1xf32>
    %cst_38 = arith.constant 1.400000e+01 : f32
    %120 = vector.broadcast %cst_38 : f32 to vector<16x1xf32>
    %121 = arith.subf %120, %11 : vector<16x1xf32>
    %cst_39 = arith.constant 1.000000e+00 : f32
    %122 = vector.broadcast %cst_39 : f32 to vector<16x1xf32>
    %123 = arith.addf %121, %122 : vector<16x1xf32>
    %cst_40 = arith.constant 1.000000e+00 : f32
    %124 = vector.broadcast %cst_40 : f32 to vector<16x1xf32>
    %125 = arith.maximumf %123, %124 : vector<16x1xf32>
    %c14_i32 = arith.constant 14 : i32
    %126 = vector.broadcast %c14_i32 : i32 to vector<16x1xi32>
    %127 = arith.cmpi sle, %10, %126 : vector<16x1xi32>
    %128 = vector.broadcast %119 : vector<1x1xf32> to vector<16x1xf32>
    %129 = arith.subf %128, %76 : vector<16x1xf32>
    %130 = arith.divf %129, %125 : vector<16x1xf32>
    %cst_41 = arith.constant 0xFF800000 : f32
    %131 = vector.broadcast %cst_41 : f32 to vector<16x1xf32>
    %132 = arith.select %127, %130, %131 : vector<16x1xi1>, vector<16x1xf32>
    %133 = arith.maximumf %100, %132 : vector<16x1xf32>
    %c14_i32_42 = arith.constant 14 : i32
    %134 = vector.broadcast %c14_i32_42 : i32 to vector<16x1xi32>
    %135 = arith.cmpi sle, %10, %134 : vector<16x1xi32>
    %cst_43 = arith.constant 0x7F800000 : f32
    %136 = vector.broadcast %cst_43 : f32 to vector<16x1xf32>
    %137 = arith.select %135, %133, %136 : vector<16x1xi1>, vector<16x1xf32>
    %cst_44 = arith.constant dense<0x7F800000> : vector<1xf32>
    %138 = vector.multi_reduction <minimumf>, %137, %cst_44 [0] : vector<16x1xf32> to vector<1xf32>
    %139 = vector.shape_cast %138 : vector<1xf32> to vector<1x1xf32>
    %cst_45 = arith.constant 1.400000e+01 : f32
    %140 = vector.broadcast %cst_45 : f32 to vector<16x1xf32>
    %141 = arith.cmpf oeq, %41, %140 : vector<16x1xf32>
    %142 = vector.shape_cast %139 : vector<1x1xf32> to vector<1x1xf32>
    %143 = vector.broadcast %142 : vector<1x1xf32> to vector<16x1xf32>
    %144 = arith.select %141, %143, %111 : vector<16x1xi1>, vector<16x1xf32>
    %cst_46 = arith.constant 1.300000e+01 : f32
    %145 = vector.broadcast %cst_46 : f32 to vector<16x1xf32>
    %146 = arith.cmpf ole, %41, %145 : vector<16x1xf32>
    %cst_47 = arith.constant 0.000000e+00 : f32
    %147 = vector.broadcast %cst_47 : f32 to vector<16x1xf32>
    %148 = arith.select %146, %56, %147 : vector<16x1xi1>, vector<16x1xf32>
    %cst_48 = arith.constant dense<0.000000e+00> : vector<1xf32>
    %149 = vector.multi_reduction <add>, %148, %cst_48 [0] : vector<16x1xf32> to vector<1xf32>
    %150 = vector.shape_cast %149 : vector<1xf32> to vector<1x1xf32>
    %cst_49 = arith.constant 1.330000e+02 : f32
    %151 = vector.broadcast %cst_49 : f32 to vector<1x1xf32>
    %152 = arith.subf %150, %151 : vector<1x1xf32>
    %cst_50 = arith.constant 1.300000e+01 : f32
    %153 = vector.broadcast %cst_50 : f32 to vector<16x1xf32>
    %154 = arith.subf %153, %11 : vector<16x1xf32>
    %cst_51 = arith.constant 1.000000e+00 : f32
    %155 = vector.broadcast %cst_51 : f32 to vector<16x1xf32>
    %156 = arith.addf %154, %155 : vector<16x1xf32>
    %cst_52 = arith.constant 1.000000e+00 : f32
    %157 = vector.broadcast %cst_52 : f32 to vector<16x1xf32>
    %158 = arith.maximumf %156, %157 : vector<16x1xf32>
    %c13_i32 = arith.constant 13 : i32
    %159 = vector.broadcast %c13_i32 : i32 to vector<16x1xi32>
    %160 = arith.cmpi sle, %10, %159 : vector<16x1xi32>
    %161 = vector.broadcast %152 : vector<1x1xf32> to vector<16x1xf32>
    %162 = arith.subf %161, %76 : vector<16x1xf32>
    %163 = arith.divf %162, %158 : vector<16x1xf32>
    %cst_53 = arith.constant 0xFF800000 : f32
    %164 = vector.broadcast %cst_53 : f32 to vector<16x1xf32>
    %165 = arith.select %160, %163, %164 : vector<16x1xi1>, vector<16x1xf32>
    %166 = arith.maximumf %133, %165 : vector<16x1xf32>
    %c13_i32_54 = arith.constant 13 : i32
    %167 = vector.broadcast %c13_i32_54 : i32 to vector<16x1xi32>
    %168 = arith.cmpi sle, %10, %167 : vector<16x1xi32>
    %cst_55 = arith.constant 0x7F800000 : f32
    %169 = vector.broadcast %cst_55 : f32 to vector<16x1xf32>
    %170 = arith.select %168, %166, %169 : vector<16x1xi1>, vector<16x1xf32>
    %cst_56 = arith.constant dense<0x7F800000> : vector<1xf32>
    %171 = vector.multi_reduction <minimumf>, %170, %cst_56 [0] : vector<16x1xf32> to vector<1xf32>
    %172 = vector.shape_cast %171 : vector<1xf32> to vector<1x1xf32>
    %cst_57 = arith.constant 1.300000e+01 : f32
    %173 = vector.broadcast %cst_57 : f32 to vector<16x1xf32>
    %174 = arith.cmpf oeq, %41, %173 : vector<16x1xf32>
    %175 = vector.shape_cast %172 : vector<1x1xf32> to vector<1x1xf32>
    %176 = vector.broadcast %175 : vector<1x1xf32> to vector<16x1xf32>
    %177 = arith.select %174, %176, %144 : vector<16x1xi1>, vector<16x1xf32>
    %cst_58 = arith.constant 1.200000e+01 : f32
    %178 = vector.broadcast %cst_58 : f32 to vector<16x1xf32>
    %179 = arith.cmpf ole, %41, %178 : vector<16x1xf32>
    %cst_59 = arith.constant 0.000000e+00 : f32
    %180 = vector.broadcast %cst_59 : f32 to vector<16x1xf32>
    %181 = arith.select %179, %56, %180 : vector<16x1xi1>, vector<16x1xf32>
    %cst_60 = arith.constant dense<0.000000e+00> : vector<1xf32>
    %182 = vector.multi_reduction <add>, %181, %cst_60 [0] : vector<16x1xf32> to vector<1xf32>
    %183 = vector.shape_cast %182 : vector<1xf32> to vector<1x1xf32>
    %cst_61 = arith.constant 1.300000e+02 : f32
    %184 = vector.broadcast %cst_61 : f32 to vector<1x1xf32>
    %185 = arith.subf %183, %184 : vector<1x1xf32>
    %cst_62 = arith.constant 1.200000e+01 : f32
    %186 = vector.broadcast %cst_62 : f32 to vector<16x1xf32>
    %187 = arith.subf %186, %11 : vector<16x1xf32>
    %cst_63 = arith.constant 1.000000e+00 : f32
    %188 = vector.broadcast %cst_63 : f32 to vector<16x1xf32>
    %189 = arith.addf %187, %188 : vector<16x1xf32>
    %cst_64 = arith.constant 1.000000e+00 : f32
    %190 = vector.broadcast %cst_64 : f32 to vector<16x1xf32>
    %191 = arith.maximumf %189, %190 : vector<16x1xf32>
    %c12_i32 = arith.constant 12 : i32
    %192 = vector.broadcast %c12_i32 : i32 to vector<16x1xi32>
    %193 = arith.cmpi sle, %10, %192 : vector<16x1xi32>
    %194 = vector.broadcast %185 : vector<1x1xf32> to vector<16x1xf32>
    %195 = arith.subf %194, %76 : vector<16x1xf32>
    %196 = arith.divf %195, %191 : vector<16x1xf32>
    %cst_65 = arith.constant 0xFF800000 : f32
    %197 = vector.broadcast %cst_65 : f32 to vector<16x1xf32>
    %198 = arith.select %193, %196, %197 : vector<16x1xi1>, vector<16x1xf32>
    %199 = arith.maximumf %166, %198 : vector<16x1xf32>
    %c12_i32_66 = arith.constant 12 : i32
    %200 = vector.broadcast %c12_i32_66 : i32 to vector<16x1xi32>
    %201 = arith.cmpi sle, %10, %200 : vector<16x1xi32>
    %cst_67 = arith.constant 0x7F800000 : f32
    %202 = vector.broadcast %cst_67 : f32 to vector<16x1xf32>
    %203 = arith.select %201, %199, %202 : vector<16x1xi1>, vector<16x1xf32>
    %cst_68 = arith.constant dense<0x7F800000> : vector<1xf32>
    %204 = vector.multi_reduction <minimumf>, %203, %cst_68 [0] : vector<16x1xf32> to vector<1xf32>
    %205 = vector.shape_cast %204 : vector<1xf32> to vector<1x1xf32>
    %cst_69 = arith.constant 1.200000e+01 : f32
    %206 = vector.broadcast %cst_69 : f32 to vector<16x1xf32>
    %207 = arith.cmpf oeq, %41, %206 : vector<16x1xf32>
    %208 = vector.shape_cast %205 : vector<1x1xf32> to vector<1x1xf32>
    %209 = vector.broadcast %208 : vector<1x1xf32> to vector<16x1xf32>
    %210 = arith.select %207, %209, %177 : vector<16x1xi1>, vector<16x1xf32>
    %cst_70 = arith.constant 1.100000e+01 : f32
    %211 = vector.broadcast %cst_70 : f32 to vector<16x1xf32>
    %212 = arith.cmpf ole, %41, %211 : vector<16x1xf32>
    %cst_71 = arith.constant 0.000000e+00 : f32
    %213 = vector.broadcast %cst_71 : f32 to vector<16x1xf32>
    %214 = arith.select %212, %56, %213 : vector<16x1xi1>, vector<16x1xf32>
    %cst_72 = arith.constant dense<0.000000e+00> : vector<1xf32>
    %215 = vector.multi_reduction <add>, %214, %cst_72 [0] : vector<16x1xf32> to vector<1xf32>
    %216 = vector.shape_cast %215 : vector<1xf32> to vector<1x1xf32>
    %cst_73 = arith.constant 1.260000e+02 : f32
    %217 = vector.broadcast %cst_73 : f32 to vector<1x1xf32>
    %218 = arith.subf %216, %217 : vector<1x1xf32>
    %cst_74 = arith.constant 1.100000e+01 : f32
    %219 = vector.broadcast %cst_74 : f32 to vector<16x1xf32>
    %220 = arith.subf %219, %11 : vector<16x1xf32>
    %cst_75 = arith.constant 1.000000e+00 : f32
    %221 = vector.broadcast %cst_75 : f32 to vector<16x1xf32>
    %222 = arith.addf %220, %221 : vector<16x1xf32>
    %cst_76 = arith.constant 1.000000e+00 : f32
    %223 = vector.broadcast %cst_76 : f32 to vector<16x1xf32>
    %224 = arith.maximumf %222, %223 : vector<16x1xf32>
    %c11_i32 = arith.constant 11 : i32
    %225 = vector.broadcast %c11_i32 : i32 to vector<16x1xi32>
    %226 = arith.cmpi sle, %10, %225 : vector<16x1xi32>
    %227 = vector.broadcast %218 : vector<1x1xf32> to vector<16x1xf32>
    %228 = arith.subf %227, %76 : vector<16x1xf32>
    %229 = arith.divf %228, %224 : vector<16x1xf32>
    %cst_77 = arith.constant 0xFF800000 : f32
    %230 = vector.broadcast %cst_77 : f32 to vector<16x1xf32>
    %231 = arith.select %226, %229, %230 : vector<16x1xi1>, vector<16x1xf32>
    %232 = arith.maximumf %199, %231 : vector<16x1xf32>
    %c11_i32_78 = arith.constant 11 : i32
    %233 = vector.broadcast %c11_i32_78 : i32 to vector<16x1xi32>
    %234 = arith.cmpi sle, %10, %233 : vector<16x1xi32>
    %cst_79 = arith.constant 0x7F800000 : f32
    %235 = vector.broadcast %cst_79 : f32 to vector<16x1xf32>
    %236 = arith.select %234, %232, %235 : vector<16x1xi1>, vector<16x1xf32>
    %cst_80 = arith.constant dense<0x7F800000> : vector<1xf32>
    %237 = vector.multi_reduction <minimumf>, %236, %cst_80 [0] : vector<16x1xf32> to vector<1xf32>
    %238 = vector.shape_cast %237 : vector<1xf32> to vector<1x1xf32>
    %cst_81 = arith.constant 1.100000e+01 : f32
    %239 = vector.broadcast %cst_81 : f32 to vector<16x1xf32>
    %240 = arith.cmpf oeq, %41, %239 : vector<16x1xf32>
    %241 = vector.shape_cast %238 : vector<1x1xf32> to vector<1x1xf32>
    %242 = vector.broadcast %241 : vector<1x1xf32> to vector<16x1xf32>
    %243 = arith.select %240, %242, %210 : vector<16x1xi1>, vector<16x1xf32>
    %cst_82 = arith.constant 1.000000e+01 : f32
    %244 = vector.broadcast %cst_82 : f32 to vector<16x1xf32>
    %245 = arith.cmpf ole, %41, %244 : vector<16x1xf32>
    %cst_83 = arith.constant 0.000000e+00 : f32
    %246 = vector.broadcast %cst_83 : f32 to vector<16x1xf32>
    %247 = arith.select %245, %56, %246 : vector<16x1xi1>, vector<16x1xf32>
    %cst_84 = arith.constant dense<0.000000e+00> : vector<1xf32>
    %248 = vector.multi_reduction <add>, %247, %cst_84 [0] : vector<16x1xf32> to vector<1xf32>
    %249 = vector.shape_cast %248 : vector<1xf32> to vector<1x1xf32>
    %cst_85 = arith.constant 1.210000e+02 : f32
    %250 = vector.broadcast %cst_85 : f32 to vector<1x1xf32>
    %251 = arith.subf %249, %250 : vector<1x1xf32>
    %cst_86 = arith.constant 1.000000e+01 : f32
    %252 = vector.broadcast %cst_86 : f32 to vector<16x1xf32>
    %253 = arith.subf %252, %11 : vector<16x1xf32>
    %cst_87 = arith.constant 1.000000e+00 : f32
    %254 = vector.broadcast %cst_87 : f32 to vector<16x1xf32>
    %255 = arith.addf %253, %254 : vector<16x1xf32>
    %cst_88 = arith.constant 1.000000e+00 : f32
    %256 = vector.broadcast %cst_88 : f32 to vector<16x1xf32>
    %257 = arith.maximumf %255, %256 : vector<16x1xf32>
    %c10_i32 = arith.constant 10 : i32
    %258 = vector.broadcast %c10_i32 : i32 to vector<16x1xi32>
    %259 = arith.cmpi sle, %10, %258 : vector<16x1xi32>
    %260 = vector.broadcast %251 : vector<1x1xf32> to vector<16x1xf32>
    %261 = arith.subf %260, %76 : vector<16x1xf32>
    %262 = arith.divf %261, %257 : vector<16x1xf32>
    %cst_89 = arith.constant 0xFF800000 : f32
    %263 = vector.broadcast %cst_89 : f32 to vector<16x1xf32>
    %264 = arith.select %259, %262, %263 : vector<16x1xi1>, vector<16x1xf32>
    %265 = arith.maximumf %232, %264 : vector<16x1xf32>
    %c10_i32_90 = arith.constant 10 : i32
    %266 = vector.broadcast %c10_i32_90 : i32 to vector<16x1xi32>
    %267 = arith.cmpi sle, %10, %266 : vector<16x1xi32>
    %cst_91 = arith.constant 0x7F800000 : f32
    %268 = vector.broadcast %cst_91 : f32 to vector<16x1xf32>
    %269 = arith.select %267, %265, %268 : vector<16x1xi1>, vector<16x1xf32>
    %cst_92 = arith.constant dense<0x7F800000> : vector<1xf32>
    %270 = vector.multi_reduction <minimumf>, %269, %cst_92 [0] : vector<16x1xf32> to vector<1xf32>
    %271 = vector.shape_cast %270 : vector<1xf32> to vector<1x1xf32>
    %cst_93 = arith.constant 1.000000e+01 : f32
    %272 = vector.broadcast %cst_93 : f32 to vector<16x1xf32>
    %273 = arith.cmpf oeq, %41, %272 : vector<16x1xf32>
    %274 = vector.shape_cast %271 : vector<1x1xf32> to vector<1x1xf32>
    %275 = vector.broadcast %274 : vector<1x1xf32> to vector<16x1xf32>
    %276 = arith.select %273, %275, %243 : vector<16x1xi1>, vector<16x1xf32>
    %cst_94 = arith.constant 9.000000e+00 : f32
    %277 = vector.broadcast %cst_94 : f32 to vector<16x1xf32>
    %278 = arith.cmpf ole, %41, %277 : vector<16x1xf32>
    %cst_95 = arith.constant 0.000000e+00 : f32
    %279 = vector.broadcast %cst_95 : f32 to vector<16x1xf32>
    %280 = arith.select %278, %56, %279 : vector<16x1xi1>, vector<16x1xf32>
    %cst_96 = arith.constant dense<0.000000e+00> : vector<1xf32>
    %281 = vector.multi_reduction <add>, %280, %cst_96 [0] : vector<16x1xf32> to vector<1xf32>
    %282 = vector.shape_cast %281 : vector<1xf32> to vector<1x1xf32>
    %cst_97 = arith.constant 1.150000e+02 : f32
    %283 = vector.broadcast %cst_97 : f32 to vector<1x1xf32>
    %284 = arith.subf %282, %283 : vector<1x1xf32>
    %cst_98 = arith.constant 9.000000e+00 : f32
    %285 = vector.broadcast %cst_98 : f32 to vector<16x1xf32>
    %286 = arith.subf %285, %11 : vector<16x1xf32>
    %cst_99 = arith.constant 1.000000e+00 : f32
    %287 = vector.broadcast %cst_99 : f32 to vector<16x1xf32>
    %288 = arith.addf %286, %287 : vector<16x1xf32>
    %cst_100 = arith.constant 1.000000e+00 : f32
    %289 = vector.broadcast %cst_100 : f32 to vector<16x1xf32>
    %290 = arith.maximumf %288, %289 : vector<16x1xf32>
    %c9_i32 = arith.constant 9 : i32
    %291 = vector.broadcast %c9_i32 : i32 to vector<16x1xi32>
    %292 = arith.cmpi sle, %10, %291 : vector<16x1xi32>
    %293 = vector.broadcast %284 : vector<1x1xf32> to vector<16x1xf32>
    %294 = arith.subf %293, %76 : vector<16x1xf32>
    %295 = arith.divf %294, %290 : vector<16x1xf32>
    %cst_101 = arith.constant 0xFF800000 : f32
    %296 = vector.broadcast %cst_101 : f32 to vector<16x1xf32>
    %297 = arith.select %292, %295, %296 : vector<16x1xi1>, vector<16x1xf32>
    %298 = arith.maximumf %265, %297 : vector<16x1xf32>
    %c9_i32_102 = arith.constant 9 : i32
    %299 = vector.broadcast %c9_i32_102 : i32 to vector<16x1xi32>
    %300 = arith.cmpi sle, %10, %299 : vector<16x1xi32>
    %cst_103 = arith.constant 0x7F800000 : f32
    %301 = vector.broadcast %cst_103 : f32 to vector<16x1xf32>
    %302 = arith.select %300, %298, %301 : vector<16x1xi1>, vector<16x1xf32>
    %cst_104 = arith.constant dense<0x7F800000> : vector<1xf32>
    %303 = vector.multi_reduction <minimumf>, %302, %cst_104 [0] : vector<16x1xf32> to vector<1xf32>
    %304 = vector.shape_cast %303 : vector<1xf32> to vector<1x1xf32>
    %cst_105 = arith.constant 9.000000e+00 : f32
    %305 = vector.broadcast %cst_105 : f32 to vector<16x1xf32>
    %306 = arith.cmpf oeq, %41, %305 : vector<16x1xf32>
    %307 = vector.shape_cast %304 : vector<1x1xf32> to vector<1x1xf32>
    %308 = vector.broadcast %307 : vector<1x1xf32> to vector<16x1xf32>
    %309 = arith.select %306, %308, %276 : vector<16x1xi1>, vector<16x1xf32>
    %cst_106 = arith.constant 8.000000e+00 : f32
    %310 = vector.broadcast %cst_106 : f32 to vector<16x1xf32>
    %311 = arith.cmpf ole, %41, %310 : vector<16x1xf32>
    %cst_107 = arith.constant 0.000000e+00 : f32
    %312 = vector.broadcast %cst_107 : f32 to vector<16x1xf32>
    %313 = arith.select %311, %56, %312 : vector<16x1xi1>, vector<16x1xf32>
    %cst_108 = arith.constant dense<0.000000e+00> : vector<1xf32>
    %314 = vector.multi_reduction <add>, %313, %cst_108 [0] : vector<16x1xf32> to vector<1xf32>
    %315 = vector.shape_cast %314 : vector<1xf32> to vector<1x1xf32>
    %cst_109 = arith.constant 1.080000e+02 : f32
    %316 = vector.broadcast %cst_109 : f32 to vector<1x1xf32>
    %317 = arith.subf %315, %316 : vector<1x1xf32>
    %cst_110 = arith.constant 8.000000e+00 : f32
    %318 = vector.broadcast %cst_110 : f32 to vector<16x1xf32>
    %319 = arith.subf %318, %11 : vector<16x1xf32>
    %cst_111 = arith.constant 1.000000e+00 : f32
    %320 = vector.broadcast %cst_111 : f32 to vector<16x1xf32>
    %321 = arith.addf %319, %320 : vector<16x1xf32>
    %cst_112 = arith.constant 1.000000e+00 : f32
    %322 = vector.broadcast %cst_112 : f32 to vector<16x1xf32>
    %323 = arith.maximumf %321, %322 : vector<16x1xf32>
    %c8_i32 = arith.constant 8 : i32
    %324 = vector.broadcast %c8_i32 : i32 to vector<16x1xi32>
    %325 = arith.cmpi sle, %10, %324 : vector<16x1xi32>
    %326 = vector.broadcast %317 : vector<1x1xf32> to vector<16x1xf32>
    %327 = arith.subf %326, %76 : vector<16x1xf32>
    %328 = arith.divf %327, %323 : vector<16x1xf32>
    %cst_113 = arith.constant 0xFF800000 : f32
    %329 = vector.broadcast %cst_113 : f32 to vector<16x1xf32>
    %330 = arith.select %325, %328, %329 : vector<16x1xi1>, vector<16x1xf32>
    %331 = arith.maximumf %298, %330 : vector<16x1xf32>
    %c8_i32_114 = arith.constant 8 : i32
    %332 = vector.broadcast %c8_i32_114 : i32 to vector<16x1xi32>
    %333 = arith.cmpi sle, %10, %332 : vector<16x1xi32>
    %cst_115 = arith.constant 0x7F800000 : f32
    %334 = vector.broadcast %cst_115 : f32 to vector<16x1xf32>
    %335 = arith.select %333, %331, %334 : vector<16x1xi1>, vector<16x1xf32>
    %cst_116 = arith.constant dense<0x7F800000> : vector<1xf32>
    %336 = vector.multi_reduction <minimumf>, %335, %cst_116 [0] : vector<16x1xf32> to vector<1xf32>
    %337 = vector.shape_cast %336 : vector<1xf32> to vector<1x1xf32>
    %cst_117 = arith.constant 8.000000e+00 : f32
    %338 = vector.broadcast %cst_117 : f32 to vector<16x1xf32>
    %339 = arith.cmpf oeq, %41, %338 : vector<16x1xf32>
    %340 = vector.shape_cast %337 : vector<1x1xf32> to vector<1x1xf32>
    %341 = vector.broadcast %340 : vector<1x1xf32> to vector<16x1xf32>
    %342 = arith.select %339, %341, %309 : vector<16x1xi1>, vector<16x1xf32>
    %cst_118 = arith.constant 7.000000e+00 : f32
    %343 = vector.broadcast %cst_118 : f32 to vector<16x1xf32>
    %344 = arith.cmpf ole, %41, %343 : vector<16x1xf32>
    %cst_119 = arith.constant 0.000000e+00 : f32
    %345 = vector.broadcast %cst_119 : f32 to vector<16x1xf32>
    %346 = arith.select %344, %56, %345 : vector<16x1xi1>, vector<16x1xf32>
    %cst_120 = arith.constant dense<0.000000e+00> : vector<1xf32>
    %347 = vector.multi_reduction <add>, %346, %cst_120 [0] : vector<16x1xf32> to vector<1xf32>
    %348 = vector.shape_cast %347 : vector<1xf32> to vector<1x1xf32>
    %cst_121 = arith.constant 1.000000e+02 : f32
    %349 = vector.broadcast %cst_121 : f32 to vector<1x1xf32>
    %350 = arith.subf %348, %349 : vector<1x1xf32>
    %cst_122 = arith.constant 7.000000e+00 : f32
    %351 = vector.broadcast %cst_122 : f32 to vector<16x1xf32>
    %352 = arith.subf %351, %11 : vector<16x1xf32>
    %cst_123 = arith.constant 1.000000e+00 : f32
    %353 = vector.broadcast %cst_123 : f32 to vector<16x1xf32>
    %354 = arith.addf %352, %353 : vector<16x1xf32>
    %cst_124 = arith.constant 1.000000e+00 : f32
    %355 = vector.broadcast %cst_124 : f32 to vector<16x1xf32>
    %356 = arith.maximumf %354, %355 : vector<16x1xf32>
    %c7_i32 = arith.constant 7 : i32
    %357 = vector.broadcast %c7_i32 : i32 to vector<16x1xi32>
    %358 = arith.cmpi sle, %10, %357 : vector<16x1xi32>
    %359 = vector.broadcast %350 : vector<1x1xf32> to vector<16x1xf32>
    %360 = arith.subf %359, %76 : vector<16x1xf32>
    %361 = arith.divf %360, %356 : vector<16x1xf32>
    %cst_125 = arith.constant 0xFF800000 : f32
    %362 = vector.broadcast %cst_125 : f32 to vector<16x1xf32>
    %363 = arith.select %358, %361, %362 : vector<16x1xi1>, vector<16x1xf32>
    %364 = arith.maximumf %331, %363 : vector<16x1xf32>
    %c7_i32_126 = arith.constant 7 : i32
    %365 = vector.broadcast %c7_i32_126 : i32 to vector<16x1xi32>
    %366 = arith.cmpi sle, %10, %365 : vector<16x1xi32>
    %cst_127 = arith.constant 0x7F800000 : f32
    %367 = vector.broadcast %cst_127 : f32 to vector<16x1xf32>
    %368 = arith.select %366, %364, %367 : vector<16x1xi1>, vector<16x1xf32>
    %cst_128 = arith.constant dense<0x7F800000> : vector<1xf32>
    %369 = vector.multi_reduction <minimumf>, %368, %cst_128 [0] : vector<16x1xf32> to vector<1xf32>
    %370 = vector.shape_cast %369 : vector<1xf32> to vector<1x1xf32>
    %cst_129 = arith.constant 7.000000e+00 : f32
    %371 = vector.broadcast %cst_129 : f32 to vector<16x1xf32>
    %372 = arith.cmpf oeq, %41, %371 : vector<16x1xf32>
    %373 = vector.shape_cast %370 : vector<1x1xf32> to vector<1x1xf32>
    %374 = vector.broadcast %373 : vector<1x1xf32> to vector<16x1xf32>
    %375 = arith.select %372, %374, %342 : vector<16x1xi1>, vector<16x1xf32>
    %cst_130 = arith.constant 6.000000e+00 : f32
    %376 = vector.broadcast %cst_130 : f32 to vector<16x1xf32>
    %377 = arith.cmpf ole, %41, %376 : vector<16x1xf32>
    %cst_131 = arith.constant 0.000000e+00 : f32
    %378 = vector.broadcast %cst_131 : f32 to vector<16x1xf32>
    %379 = arith.select %377, %56, %378 : vector<16x1xi1>, vector<16x1xf32>
    %cst_132 = arith.constant dense<0.000000e+00> : vector<1xf32>
    %380 = vector.multi_reduction <add>, %379, %cst_132 [0] : vector<16x1xf32> to vector<1xf32>
    %381 = vector.shape_cast %380 : vector<1xf32> to vector<1x1xf32>
    %cst_133 = arith.constant 9.100000e+01 : f32
    %382 = vector.broadcast %cst_133 : f32 to vector<1x1xf32>
    %383 = arith.subf %381, %382 : vector<1x1xf32>
    %cst_134 = arith.constant 6.000000e+00 : f32
    %384 = vector.broadcast %cst_134 : f32 to vector<16x1xf32>
    %385 = arith.subf %384, %11 : vector<16x1xf32>
    %cst_135 = arith.constant 1.000000e+00 : f32
    %386 = vector.broadcast %cst_135 : f32 to vector<16x1xf32>
    %387 = arith.addf %385, %386 : vector<16x1xf32>
    %cst_136 = arith.constant 1.000000e+00 : f32
    %388 = vector.broadcast %cst_136 : f32 to vector<16x1xf32>
    %389 = arith.maximumf %387, %388 : vector<16x1xf32>
    %c6_i32 = arith.constant 6 : i32
    %390 = vector.broadcast %c6_i32 : i32 to vector<16x1xi32>
    %391 = arith.cmpi sle, %10, %390 : vector<16x1xi32>
    %392 = vector.broadcast %383 : vector<1x1xf32> to vector<16x1xf32>
    %393 = arith.subf %392, %76 : vector<16x1xf32>
    %394 = arith.divf %393, %389 : vector<16x1xf32>
    %cst_137 = arith.constant 0xFF800000 : f32
    %395 = vector.broadcast %cst_137 : f32 to vector<16x1xf32>
    %396 = arith.select %391, %394, %395 : vector<16x1xi1>, vector<16x1xf32>
    %397 = arith.maximumf %364, %396 : vector<16x1xf32>
    %c6_i32_138 = arith.constant 6 : i32
    %398 = vector.broadcast %c6_i32_138 : i32 to vector<16x1xi32>
    %399 = arith.cmpi sle, %10, %398 : vector<16x1xi32>
    %cst_139 = arith.constant 0x7F800000 : f32
    %400 = vector.broadcast %cst_139 : f32 to vector<16x1xf32>
    %401 = arith.select %399, %397, %400 : vector<16x1xi1>, vector<16x1xf32>
    %cst_140 = arith.constant dense<0x7F800000> : vector<1xf32>
    %402 = vector.multi_reduction <minimumf>, %401, %cst_140 [0] : vector<16x1xf32> to vector<1xf32>
    %403 = vector.shape_cast %402 : vector<1xf32> to vector<1x1xf32>
    %cst_141 = arith.constant 6.000000e+00 : f32
    %404 = vector.broadcast %cst_141 : f32 to vector<16x1xf32>
    %405 = arith.cmpf oeq, %41, %404 : vector<16x1xf32>
    %406 = vector.shape_cast %403 : vector<1x1xf32> to vector<1x1xf32>
    %407 = vector.broadcast %406 : vector<1x1xf32> to vector<16x1xf32>
    %408 = arith.select %405, %407, %375 : vector<16x1xi1>, vector<16x1xf32>
    %cst_142 = arith.constant 5.000000e+00 : f32
    %409 = vector.broadcast %cst_142 : f32 to vector<16x1xf32>
    %410 = arith.cmpf ole, %41, %409 : vector<16x1xf32>
    %cst_143 = arith.constant 0.000000e+00 : f32
    %411 = vector.broadcast %cst_143 : f32 to vector<16x1xf32>
    %412 = arith.select %410, %56, %411 : vector<16x1xi1>, vector<16x1xf32>
    %cst_144 = arith.constant dense<0.000000e+00> : vector<1xf32>
    %413 = vector.multi_reduction <add>, %412, %cst_144 [0] : vector<16x1xf32> to vector<1xf32>
    %414 = vector.shape_cast %413 : vector<1xf32> to vector<1x1xf32>
    %cst_145 = arith.constant 8.100000e+01 : f32
    %415 = vector.broadcast %cst_145 : f32 to vector<1x1xf32>
    %416 = arith.subf %414, %415 : vector<1x1xf32>
    %cst_146 = arith.constant 5.000000e+00 : f32
    %417 = vector.broadcast %cst_146 : f32 to vector<16x1xf32>
    %418 = arith.subf %417, %11 : vector<16x1xf32>
    %cst_147 = arith.constant 1.000000e+00 : f32
    %419 = vector.broadcast %cst_147 : f32 to vector<16x1xf32>
    %420 = arith.addf %418, %419 : vector<16x1xf32>
    %cst_148 = arith.constant 1.000000e+00 : f32
    %421 = vector.broadcast %cst_148 : f32 to vector<16x1xf32>
    %422 = arith.maximumf %420, %421 : vector<16x1xf32>
    %c5_i32 = arith.constant 5 : i32
    %423 = vector.broadcast %c5_i32 : i32 to vector<16x1xi32>
    %424 = arith.cmpi sle, %10, %423 : vector<16x1xi32>
    %425 = vector.broadcast %416 : vector<1x1xf32> to vector<16x1xf32>
    %426 = arith.subf %425, %76 : vector<16x1xf32>
    %427 = arith.divf %426, %422 : vector<16x1xf32>
    %cst_149 = arith.constant 0xFF800000 : f32
    %428 = vector.broadcast %cst_149 : f32 to vector<16x1xf32>
    %429 = arith.select %424, %427, %428 : vector<16x1xi1>, vector<16x1xf32>
    %430 = arith.maximumf %397, %429 : vector<16x1xf32>
    %c5_i32_150 = arith.constant 5 : i32
    %431 = vector.broadcast %c5_i32_150 : i32 to vector<16x1xi32>
    %432 = arith.cmpi sle, %10, %431 : vector<16x1xi32>
    %cst_151 = arith.constant 0x7F800000 : f32
    %433 = vector.broadcast %cst_151 : f32 to vector<16x1xf32>
    %434 = arith.select %432, %430, %433 : vector<16x1xi1>, vector<16x1xf32>
    %cst_152 = arith.constant dense<0x7F800000> : vector<1xf32>
    %435 = vector.multi_reduction <minimumf>, %434, %cst_152 [0] : vector<16x1xf32> to vector<1xf32>
    %436 = vector.shape_cast %435 : vector<1xf32> to vector<1x1xf32>
    %cst_153 = arith.constant 5.000000e+00 : f32
    %437 = vector.broadcast %cst_153 : f32 to vector<16x1xf32>
    %438 = arith.cmpf oeq, %41, %437 : vector<16x1xf32>
    %439 = vector.shape_cast %436 : vector<1x1xf32> to vector<1x1xf32>
    %440 = vector.broadcast %439 : vector<1x1xf32> to vector<16x1xf32>
    %441 = arith.select %438, %440, %408 : vector<16x1xi1>, vector<16x1xf32>
    %cst_154 = arith.constant 4.000000e+00 : f32
    %442 = vector.broadcast %cst_154 : f32 to vector<16x1xf32>
    %443 = arith.cmpf ole, %41, %442 : vector<16x1xf32>
    %cst_155 = arith.constant 0.000000e+00 : f32
    %444 = vector.broadcast %cst_155 : f32 to vector<16x1xf32>
    %445 = arith.select %443, %56, %444 : vector<16x1xi1>, vector<16x1xf32>
    %cst_156 = arith.constant dense<0.000000e+00> : vector<1xf32>
    %446 = vector.multi_reduction <add>, %445, %cst_156 [0] : vector<16x1xf32> to vector<1xf32>
    %447 = vector.shape_cast %446 : vector<1xf32> to vector<1x1xf32>
    %cst_157 = arith.constant 7.000000e+01 : f32
    %448 = vector.broadcast %cst_157 : f32 to vector<1x1xf32>
    %449 = arith.subf %447, %448 : vector<1x1xf32>
    %cst_158 = arith.constant 4.000000e+00 : f32
    %450 = vector.broadcast %cst_158 : f32 to vector<16x1xf32>
    %451 = arith.subf %450, %11 : vector<16x1xf32>
    %cst_159 = arith.constant 1.000000e+00 : f32
    %452 = vector.broadcast %cst_159 : f32 to vector<16x1xf32>
    %453 = arith.addf %451, %452 : vector<16x1xf32>
    %cst_160 = arith.constant 1.000000e+00 : f32
    %454 = vector.broadcast %cst_160 : f32 to vector<16x1xf32>
    %455 = arith.maximumf %453, %454 : vector<16x1xf32>
    %c4_i32 = arith.constant 4 : i32
    %456 = vector.broadcast %c4_i32 : i32 to vector<16x1xi32>
    %457 = arith.cmpi sle, %10, %456 : vector<16x1xi32>
    %458 = vector.broadcast %449 : vector<1x1xf32> to vector<16x1xf32>
    %459 = arith.subf %458, %76 : vector<16x1xf32>
    %460 = arith.divf %459, %455 : vector<16x1xf32>
    %cst_161 = arith.constant 0xFF800000 : f32
    %461 = vector.broadcast %cst_161 : f32 to vector<16x1xf32>
    %462 = arith.select %457, %460, %461 : vector<16x1xi1>, vector<16x1xf32>
    %463 = arith.maximumf %430, %462 : vector<16x1xf32>
    %c4_i32_162 = arith.constant 4 : i32
    %464 = vector.broadcast %c4_i32_162 : i32 to vector<16x1xi32>
    %465 = arith.cmpi sle, %10, %464 : vector<16x1xi32>
    %cst_163 = arith.constant 0x7F800000 : f32
    %466 = vector.broadcast %cst_163 : f32 to vector<16x1xf32>
    %467 = arith.select %465, %463, %466 : vector<16x1xi1>, vector<16x1xf32>
    %cst_164 = arith.constant dense<0x7F800000> : vector<1xf32>
    %468 = vector.multi_reduction <minimumf>, %467, %cst_164 [0] : vector<16x1xf32> to vector<1xf32>
    %469 = vector.shape_cast %468 : vector<1xf32> to vector<1x1xf32>
    %cst_165 = arith.constant 4.000000e+00 : f32
    %470 = vector.broadcast %cst_165 : f32 to vector<16x1xf32>
    %471 = arith.cmpf oeq, %41, %470 : vector<16x1xf32>
    %472 = vector.shape_cast %469 : vector<1x1xf32> to vector<1x1xf32>
    %473 = vector.broadcast %472 : vector<1x1xf32> to vector<16x1xf32>
    %474 = arith.select %471, %473, %441 : vector<16x1xi1>, vector<16x1xf32>
    %cst_166 = arith.constant 3.000000e+00 : f32
    %475 = vector.broadcast %cst_166 : f32 to vector<16x1xf32>
    %476 = arith.cmpf ole, %41, %475 : vector<16x1xf32>
    %cst_167 = arith.constant 0.000000e+00 : f32
    %477 = vector.broadcast %cst_167 : f32 to vector<16x1xf32>
    %478 = arith.select %476, %56, %477 : vector<16x1xi1>, vector<16x1xf32>
    %cst_168 = arith.constant dense<0.000000e+00> : vector<1xf32>
    %479 = vector.multi_reduction <add>, %478, %cst_168 [0] : vector<16x1xf32> to vector<1xf32>
    %480 = vector.shape_cast %479 : vector<1xf32> to vector<1x1xf32>
    %cst_169 = arith.constant 5.800000e+01 : f32
    %481 = vector.broadcast %cst_169 : f32 to vector<1x1xf32>
    %482 = arith.subf %480, %481 : vector<1x1xf32>
    %cst_170 = arith.constant 3.000000e+00 : f32
    %483 = vector.broadcast %cst_170 : f32 to vector<16x1xf32>
    %484 = arith.subf %483, %11 : vector<16x1xf32>
    %cst_171 = arith.constant 1.000000e+00 : f32
    %485 = vector.broadcast %cst_171 : f32 to vector<16x1xf32>
    %486 = arith.addf %484, %485 : vector<16x1xf32>
    %cst_172 = arith.constant 1.000000e+00 : f32
    %487 = vector.broadcast %cst_172 : f32 to vector<16x1xf32>
    %488 = arith.maximumf %486, %487 : vector<16x1xf32>
    %c3_i32 = arith.constant 3 : i32
    %489 = vector.broadcast %c3_i32 : i32 to vector<16x1xi32>
    %490 = arith.cmpi sle, %10, %489 : vector<16x1xi32>
    %491 = vector.broadcast %482 : vector<1x1xf32> to vector<16x1xf32>
    %492 = arith.subf %491, %76 : vector<16x1xf32>
    %493 = arith.divf %492, %488 : vector<16x1xf32>
    %cst_173 = arith.constant 0xFF800000 : f32
    %494 = vector.broadcast %cst_173 : f32 to vector<16x1xf32>
    %495 = arith.select %490, %493, %494 : vector<16x1xi1>, vector<16x1xf32>
    %496 = arith.maximumf %463, %495 : vector<16x1xf32>
    %c3_i32_174 = arith.constant 3 : i32
    %497 = vector.broadcast %c3_i32_174 : i32 to vector<16x1xi32>
    %498 = arith.cmpi sle, %10, %497 : vector<16x1xi32>
    %cst_175 = arith.constant 0x7F800000 : f32
    %499 = vector.broadcast %cst_175 : f32 to vector<16x1xf32>
    %500 = arith.select %498, %496, %499 : vector<16x1xi1>, vector<16x1xf32>
    %cst_176 = arith.constant dense<0x7F800000> : vector<1xf32>
    %501 = vector.multi_reduction <minimumf>, %500, %cst_176 [0] : vector<16x1xf32> to vector<1xf32>
    %502 = vector.shape_cast %501 : vector<1xf32> to vector<1x1xf32>
    %cst_177 = arith.constant 3.000000e+00 : f32
    %503 = vector.broadcast %cst_177 : f32 to vector<16x1xf32>
    %504 = arith.cmpf oeq, %41, %503 : vector<16x1xf32>
    %505 = vector.shape_cast %502 : vector<1x1xf32> to vector<1x1xf32>
    %506 = vector.broadcast %505 : vector<1x1xf32> to vector<16x1xf32>
    %507 = arith.select %504, %506, %474 : vector<16x1xi1>, vector<16x1xf32>
    %cst_178 = arith.constant 2.000000e+00 : f32
    %508 = vector.broadcast %cst_178 : f32 to vector<16x1xf32>
    %509 = arith.cmpf ole, %41, %508 : vector<16x1xf32>
    %cst_179 = arith.constant 0.000000e+00 : f32
    %510 = vector.broadcast %cst_179 : f32 to vector<16x1xf32>
    %511 = arith.select %509, %56, %510 : vector<16x1xi1>, vector<16x1xf32>
    %cst_180 = arith.constant dense<0.000000e+00> : vector<1xf32>
    %512 = vector.multi_reduction <add>, %511, %cst_180 [0] : vector<16x1xf32> to vector<1xf32>
    %513 = vector.shape_cast %512 : vector<1xf32> to vector<1x1xf32>
    %cst_181 = arith.constant 4.500000e+01 : f32
    %514 = vector.broadcast %cst_181 : f32 to vector<1x1xf32>
    %515 = arith.subf %513, %514 : vector<1x1xf32>
    %cst_182 = arith.constant 2.000000e+00 : f32
    %516 = vector.broadcast %cst_182 : f32 to vector<16x1xf32>
    %517 = arith.subf %516, %11 : vector<16x1xf32>
    %cst_183 = arith.constant 1.000000e+00 : f32
    %518 = vector.broadcast %cst_183 : f32 to vector<16x1xf32>
    %519 = arith.addf %517, %518 : vector<16x1xf32>
    %cst_184 = arith.constant 1.000000e+00 : f32
    %520 = vector.broadcast %cst_184 : f32 to vector<16x1xf32>
    %521 = arith.maximumf %519, %520 : vector<16x1xf32>
    %c2_i32 = arith.constant 2 : i32
    %522 = vector.broadcast %c2_i32 : i32 to vector<16x1xi32>
    %523 = arith.cmpi sle, %10, %522 : vector<16x1xi32>
    %524 = vector.broadcast %515 : vector<1x1xf32> to vector<16x1xf32>
    %525 = arith.subf %524, %76 : vector<16x1xf32>
    %526 = arith.divf %525, %521 : vector<16x1xf32>
    %cst_185 = arith.constant 0xFF800000 : f32
    %527 = vector.broadcast %cst_185 : f32 to vector<16x1xf32>
    %528 = arith.select %523, %526, %527 : vector<16x1xi1>, vector<16x1xf32>
    %529 = arith.maximumf %496, %528 : vector<16x1xf32>
    %c2_i32_186 = arith.constant 2 : i32
    %530 = vector.broadcast %c2_i32_186 : i32 to vector<16x1xi32>
    %531 = arith.cmpi sle, %10, %530 : vector<16x1xi32>
    %cst_187 = arith.constant 0x7F800000 : f32
    %532 = vector.broadcast %cst_187 : f32 to vector<16x1xf32>
    %533 = arith.select %531, %529, %532 : vector<16x1xi1>, vector<16x1xf32>
    %cst_188 = arith.constant dense<0x7F800000> : vector<1xf32>
    %534 = vector.multi_reduction <minimumf>, %533, %cst_188 [0] : vector<16x1xf32> to vector<1xf32>
    %535 = vector.shape_cast %534 : vector<1xf32> to vector<1x1xf32>
    %cst_189 = arith.constant 2.000000e+00 : f32
    %536 = vector.broadcast %cst_189 : f32 to vector<16x1xf32>
    %537 = arith.cmpf oeq, %41, %536 : vector<16x1xf32>
    %538 = vector.shape_cast %535 : vector<1x1xf32> to vector<1x1xf32>
    %539 = vector.broadcast %538 : vector<1x1xf32> to vector<16x1xf32>
    %540 = arith.select %537, %539, %507 : vector<16x1xi1>, vector<16x1xf32>
    %cst_190 = arith.constant 1.000000e+00 : f32
    %541 = vector.broadcast %cst_190 : f32 to vector<16x1xf32>
    %542 = arith.cmpf ole, %41, %541 : vector<16x1xf32>
    %cst_191 = arith.constant 0.000000e+00 : f32
    %543 = vector.broadcast %cst_191 : f32 to vector<16x1xf32>
    %544 = arith.select %542, %56, %543 : vector<16x1xi1>, vector<16x1xf32>
    %cst_192 = arith.constant dense<0.000000e+00> : vector<1xf32>
    %545 = vector.multi_reduction <add>, %544, %cst_192 [0] : vector<16x1xf32> to vector<1xf32>
    %546 = vector.shape_cast %545 : vector<1xf32> to vector<1x1xf32>
    %cst_193 = arith.constant 3.100000e+01 : f32
    %547 = vector.broadcast %cst_193 : f32 to vector<1x1xf32>
    %548 = arith.subf %546, %547 : vector<1x1xf32>
    %cst_194 = arith.constant 1.000000e+00 : f32
    %549 = vector.broadcast %cst_194 : f32 to vector<16x1xf32>
    %550 = arith.subf %549, %11 : vector<16x1xf32>
    %cst_195 = arith.constant 1.000000e+00 : f32
    %551 = vector.broadcast %cst_195 : f32 to vector<16x1xf32>
    %552 = arith.addf %550, %551 : vector<16x1xf32>
    %cst_196 = arith.constant 1.000000e+00 : f32
    %553 = vector.broadcast %cst_196 : f32 to vector<16x1xf32>
    %554 = arith.maximumf %552, %553 : vector<16x1xf32>
    %c1_i32 = arith.constant 1 : i32
    %555 = vector.broadcast %c1_i32 : i32 to vector<16x1xi32>
    %556 = arith.cmpi sle, %10, %555 : vector<16x1xi32>
    %557 = vector.broadcast %548 : vector<1x1xf32> to vector<16x1xf32>
    %558 = arith.subf %557, %76 : vector<16x1xf32>
    %559 = arith.divf %558, %554 : vector<16x1xf32>
    %cst_197 = arith.constant 0xFF800000 : f32
    %560 = vector.broadcast %cst_197 : f32 to vector<16x1xf32>
    %561 = arith.select %556, %559, %560 : vector<16x1xi1>, vector<16x1xf32>
    %562 = arith.maximumf %529, %561 : vector<16x1xf32>
    %c1_i32_198 = arith.constant 1 : i32
    %563 = vector.broadcast %c1_i32_198 : i32 to vector<16x1xi32>
    %564 = arith.cmpi sle, %10, %563 : vector<16x1xi32>
    %cst_199 = arith.constant 0x7F800000 : f32
    %565 = vector.broadcast %cst_199 : f32 to vector<16x1xf32>
    %566 = arith.select %564, %562, %565 : vector<16x1xi1>, vector<16x1xf32>
    %cst_200 = arith.constant dense<0x7F800000> : vector<1xf32>
    %567 = vector.multi_reduction <minimumf>, %566, %cst_200 [0] : vector<16x1xf32> to vector<1xf32>
    %568 = vector.shape_cast %567 : vector<1xf32> to vector<1x1xf32>
    %cst_201 = arith.constant 1.000000e+00 : f32
    %569 = vector.broadcast %cst_201 : f32 to vector<16x1xf32>
    %570 = arith.cmpf oeq, %41, %569 : vector<16x1xf32>
    %571 = vector.shape_cast %568 : vector<1x1xf32> to vector<1x1xf32>
    %572 = vector.broadcast %571 : vector<1x1xf32> to vector<16x1xf32>
    %573 = arith.select %570, %572, %540 : vector<16x1xi1>, vector<16x1xf32>
    %cst_202 = arith.constant 0.000000e+00 : f32
    %574 = vector.broadcast %cst_202 : f32 to vector<16x1xf32>
    %575 = arith.cmpf ole, %41, %574 : vector<16x1xf32>
    %cst_203 = arith.constant 0.000000e+00 : f32
    %576 = vector.broadcast %cst_203 : f32 to vector<16x1xf32>
    %577 = arith.select %575, %56, %576 : vector<16x1xi1>, vector<16x1xf32>
    %cst_204 = arith.constant dense<0.000000e+00> : vector<1xf32>
    %578 = vector.multi_reduction <add>, %577, %cst_204 [0] : vector<16x1xf32> to vector<1xf32>
    %579 = vector.shape_cast %578 : vector<1xf32> to vector<1x1xf32>
    %cst_205 = arith.constant 1.600000e+01 : f32
    %580 = vector.broadcast %cst_205 : f32 to vector<1x1xf32>
    %581 = arith.subf %579, %580 : vector<1x1xf32>
    %cst_206 = arith.constant 0.000000e+00 : f32
    %582 = vector.broadcast %cst_206 : f32 to vector<16x1xf32>
    %583 = arith.subf %582, %11 : vector<16x1xf32>
    %cst_207 = arith.constant 1.000000e+00 : f32
    %584 = vector.broadcast %cst_207 : f32 to vector<16x1xf32>
    %585 = arith.addf %583, %584 : vector<16x1xf32>
    %cst_208 = arith.constant 1.000000e+00 : f32
    %586 = vector.broadcast %cst_208 : f32 to vector<16x1xf32>
    %587 = arith.maximumf %585, %586 : vector<16x1xf32>
    %c0_i32 = arith.constant 0 : i32
    %588 = vector.broadcast %c0_i32 : i32 to vector<16x1xi32>
    %589 = arith.cmpi sle, %10, %588 : vector<16x1xi32>
    %590 = vector.broadcast %581 : vector<1x1xf32> to vector<16x1xf32>
    %591 = arith.subf %590, %76 : vector<16x1xf32>
    %592 = arith.divf %591, %587 : vector<16x1xf32>
    %cst_209 = arith.constant 0xFF800000 : f32
    %593 = vector.broadcast %cst_209 : f32 to vector<16x1xf32>
    %594 = arith.select %589, %592, %593 : vector<16x1xi1>, vector<16x1xf32>
    %595 = arith.maximumf %562, %594 : vector<16x1xf32>
    %c0_i32_210 = arith.constant 0 : i32
    %596 = vector.broadcast %c0_i32_210 : i32 to vector<16x1xi32>
    %597 = arith.cmpi sle, %10, %596 : vector<16x1xi32>
    %cst_211 = arith.constant 0x7F800000 : f32
    %598 = vector.broadcast %cst_211 : f32 to vector<16x1xf32>
    %599 = arith.select %597, %595, %598 : vector<16x1xi1>, vector<16x1xf32>
    %cst_212 = arith.constant dense<0x7F800000> : vector<1xf32>
    %600 = vector.multi_reduction <minimumf>, %599, %cst_212 [0] : vector<16x1xf32> to vector<1xf32>
    %601 = vector.shape_cast %600 : vector<1xf32> to vector<1x1xf32>
    %cst_213 = arith.constant 0.000000e+00 : f32
    %602 = vector.broadcast %cst_213 : f32 to vector<16x1xf32>
    %603 = arith.cmpf oeq, %41, %602 : vector<16x1xf32>
    %604 = vector.shape_cast %601 : vector<1x1xf32> to vector<1x1xf32>
    %605 = vector.broadcast %604 : vector<1x1xf32> to vector<16x1xf32>
    %606 = arith.select %603, %605, %573 : vector<16x1xi1>, vector<16x1xf32>
    %607 = arith.subf %56, %606 : vector<16x1xf32>
    %cst_214 = arith.constant dense<0.000000e+00> : vector<1xf32>
    %608 = vector.multi_reduction <add>, %607, %cst_214 [0] : vector<16x1xf32> to vector<1xf32>
    %609 = vector.shape_cast %608 : vector<1xf32> to vector<1x1xf32>
    %cst_215 = arith.constant 6.250000e-02 : f32
    %610 = vector.broadcast %cst_215 : f32 to vector<1x1xf32>
    %611 = arith.mulf %609, %610 : vector<1x1xf32>
    %612 = vector.broadcast %611 : vector<1x1xf32> to vector<16x1xf32>
    %613 = arith.subf %607, %612 : vector<16x1xf32>
    %cst_216 = arith.constant dense<0.000000e+00> : vector<1xf32>
    %614 = vector.multi_reduction <add>, %28, %cst_216 [0] : vector<16x1xf32> to vector<1xf32>
    %615 = vector.shape_cast %614 : vector<1xf32> to vector<1x1xf32>
    %cst_217 = arith.constant 6.250000e-02 : f32
    %616 = vector.broadcast %cst_217 : f32 to vector<1x1xf32>
    %617 = arith.mulf %615, %616 : vector<1x1xf32>
    %618 = vector.broadcast %617 : vector<1x1xf32> to vector<16x1xf32>
    %619 = arith.subf %28, %618 : vector<16x1xf32>
    %620 = arith.mulf %613, %619 : vector<16x1xf32>
    %cst_218 = arith.constant dense<0.000000e+00> : vector<1xf32>
    %621 = vector.multi_reduction <add>, %620, %cst_218 [0] : vector<16x1xf32> to vector<1xf32>
    %622 = vector.shape_cast %621 : vector<1xf32> to vector<1x1xf32>
    %623 = arith.mulf %613, %613 : vector<16x1xf32>
    %cst_219 = arith.constant dense<0.000000e+00> : vector<1xf32>
    %624 = vector.multi_reduction <add>, %623, %cst_219 [0] : vector<16x1xf32> to vector<1xf32>
    %625 = vector.shape_cast %624 : vector<1xf32> to vector<1x1xf32>
    %626 = arith.mulf %619, %619 : vector<16x1xf32>
    %cst_220 = arith.constant dense<0.000000e+00> : vector<1xf32>
    %627 = vector.multi_reduction <add>, %626, %cst_220 [0] : vector<16x1xf32> to vector<1xf32>
    %628 = vector.shape_cast %627 : vector<1xf32> to vector<1x1xf32>
    %629 = arith.mulf %625, %628 : vector<1x1xf32>
    %cst_221 = arith.constant 1.000000e-30 : f32
    %630 = vector.broadcast %cst_221 : f32 to vector<1x1xf32>
    %631 = arith.addf %629, %630 : vector<1x1xf32>
    %632 = math.rsqrt %631 : vector<1x1xf32>
    %633 = arith.mulf %622, %632 : vector<1x1xf32>
    %cst_222 = arith.constant 1.000000e+00 : f32
    %634 = vector.broadcast %cst_222 : f32 to vector<1x1xf32>
    %635 = arith.subf %634, %633 : vector<1x1xf32>
    %c0_223 = arith.constant 0 : index
    %c0_224 = arith.constant 0 : index
    %636 = vector.load %arg3[%c0_223, %c0_224] : memref<1x1xf32, #tpu.memory_space<vmem>>, vector<1x1xf32>
    tpu.vector_store %arg3[%c0_223, %c0_224], %635 {strides = array<i32>} : memref<1x1xf32, #tpu.memory_space<vmem>>, vector<1x1xf32>,
    return
  }
  func.func @transform_0(%arg0: i32) -> (i32, i32, i32) {
    %c0_i32 = arith.constant 0 : i32
    %c0_i32_0 = arith.constant 0 : i32
    %c0_i32_1 = arith.constant 0 : i32
    return %arg0, %c0_i32, %c0_i32_0 : i32, i32, i32
  }
  func.func @transform_1(%arg0: i32) -> (i32, i32, i32) {
    %c0_i32 = arith.constant 0 : i32
    %c0_i32_0 = arith.constant 0 : i32
    %c0_i32_1 = arith.constant 0 : i32
    return %arg0, %c0_i32, %c0_i32_0 : i32, i32, i32
  }
  func.func @transform_2(%arg0: i32) -> (i32, i32) {
    %c0_i32 = arith.constant 0 : i32
    %c0_i32_0 = arith.constant 0 : i32
    return %arg0, %c0_i32 : i32, i32
  }
}

</mosaic_0001>

<llo_original>
// kernel: tpu_custom_call.1
$region0: #{tpu_custom_call.1}
  #allocation0 [shape = 'u32[]', space=smem, size = 0x4, offset = 0x4, fixed_abs, tag = 'smem constant byte address 0x4 - core index']
  #allocation1 [shape = 'u32[144,128]{1,0:T(1,128)}', space=vmem, size = 0x12000, scoped, tag = 'internal scratch']
  %s0 = inlined_call_operand.vmem [shape: f32[1,2,16], index: 0, kind: input, shape index: {}]
  %s1 = inlined_call_operand.vmem [shape: f32[1,32,1], index: 1, kind: input, shape index: {}]
  %s2 = inlined_call_operand.hbm [shape: f32[1,1], index: 2, kind: output, shape index: {}]
  %s3 = sld [smem:[#allocation0]]
  $region18: #{tpu_custom_call.1} parent=0
    _
  %s5 = ssub.s32 1, %s3
  %s6 = scalar_select 0, %s5, %s3
  $region1: #{tpu_custom_call.1} parent=0
    #allocation2 [shape = 'u8[512]{0}', space=vmem, size = 0x400, scoped, tag = 'output window, operand 0, single buffered']
    #allocation3 [shape = 's32[1]{0}', space=sflag, size = 0x4, scoped, tag = 'scoped memory for tpu_custom_call.1']
    %7 = vsyncpa [#allocation3], 0
    // Predicated region
    $region2: #{tpu_custom_call.1} parent=1 // pred_check
      _
    $region3: #{tpu_custom_call.1} parent=1 // pred_check_branch
      %9 = sbr.rel (0) target = $region5
    $region4: #{tpu_custom_call.1} parent=1 // pred_region
      _
    $region5: #{tpu_custom_call.1} parent=1 // pred_fallthru
      _
    // Predicated region
    $region6: #{tpu_custom_call.1} parent=1 // pred_check
      _
    $region7: #{tpu_custom_call.1} parent=1 // pred_check_branch
      %11 = sbr.rel (0) target = $region9
    $region8: #{tpu_custom_call.1} parent=1 // pred_region
      _
    $region9: #{tpu_custom_call.1} parent=1 // pred_fallthru
      _
    %v12 = vld [vmem:[%s0] sm:$0x1]
    %v13 = vld [vmem:[%s0 + $0x1] sm:$0x1]
    %v14 = vld [vmem:[%s1] sm:$0xff]
    %v15 = vld [vmem:[%s1 + $0x8] sm:$0xff]
    %v16 = vld [vmem:[%s1 + $0x10] sm:$0xff]
    %v17 = vld [vmem:[%s1 + $0x18] sm:$0xff]
    %v18 = vlaneseq
    %v19 = vshrl.u32 %v18, 7
    %v20 = vadd.s32 %v19, 8
    %v21 = vlaneseq
    %v22 = vand.u32 %v21, 127
    %v23 = vcvt.s32.f32 %v19
    %v24 = vcvt.s32.f32 %v20
    %v25 = vlaneseq
    %v26 = vshrl.u32 %v25, 7
    %v27 = vsub.s32 0, %v26
    %v28 = vrot.slane %v13, %v27
    %30 = vset.pattern.permute.xlu0 0
    %31 = vperm.xlu0 %30, %v16
    %v32 = vpop.permute.xlu0 %31
    %35 = vset.pattern.permute.xlu0 0
    %36 = vperm.xlu0 %35, %v17
    %v37 = vpop.permute.xlu0 %36
    %vm39 = vcmp.lt.f32.partialorder %v28, %v32
    %vm40 = vcmp.lt.f32.partialorder %v28, %v37
    %v41 = vsel %vm39, 1, 0
    %v42 = vsel %vm40, 1, 0
    %v43 = vcvt.s32.f32 %v41
    %v44 = vcvt.s32.f32 %v42
    %vm45 = vcmp.eq.f32.partialorder %v28, %v32
    %vm46 = vcmp.eq.f32.partialorder %v28, %v37
    %v47 = vsel %vm45, 1, 0
    %v48 = vsel %vm46, 1, 0
    %v49 = vcvt.s32.f32 %v47
    %v50 = vcvt.s32.f32 %v48
    %v51 = vmul.f32 %v49, 0.5
    %v52 = vmul.f32 %v50, 0.5
    %v53 = vadd.f32 %v43, %v51
    %v54 = vadd.f32 %v44, %v52
    %vm55 = vcmask 130048
    %v56 = vsel %vm55, %v53, 0.0
    %57 = vadd.xlane.f32.xlu0 %v56
    %v58 = vpop.xlane.xlu0 %57
    %v59 = vsel %vm55, %v54, 0.0
    %60 = vadd.xlane.f32.xlu0 %v59
    %v61 = vpop.xlane.xlu0 %60
    %v62 = vadd.f32 %v58, 0.5
    %v63 = vadd.f32 %v61, 0.5
    %v64 = vlaneseq
    %v65 = vshrl.u32 %v64, 7
    %v66 = vsub.s32 0, %v65
    %v67 = vrot.slane %v12, %v66
    %69 = vset.pattern.permute.xlu0 0
    %70 = vperm.xlu0 %69, %v14
    %v71 = vpop.permute.xlu0 %70
    %74 = vset.pattern.permute.xlu0 0
    %75 = vperm.xlu0 %74, %v15
    %v76 = vpop.permute.xlu0 %75
    %vm78 = vcmp.gt.f32.partialorder %v67, %v71
    %vm79 = vcmp.gt.f32.partialorder %v67, %v76
    %vm80 = vcmp.eq.f32.partialorder %v67, %v71
    %vm81 = vcmp.eq.f32.partialorder %v67, %v76
    %vm82 = vcmp.lt.s32.totalorder %v22, %v19
    %vm83 = vcmp.lt.s32.totalorder %v22, %v20
    %vm84 = vmand %vm80, %vm82
    %vm85 = vmand %vm81, %vm83
    %vm86 = vmor %vm78, %vm84
    %vm87 = vmor %vm79, %vm85
    %v88 = vsel %vm86, 1, 0
    %v89 = vsel %vm87, 1, 0
    %v90 = vcvt.s32.f32 %v88
    %v91 = vcvt.s32.f32 %v89
    %v92 = vsel %vm55, %v90, 0.0
    %93 = vadd.xlane.f32.xlu0 %v92
    %v94 = vpop.xlane.xlu0 %93
    %v95 = vsel %vm55, %v91, 0.0
    %96 = vadd.xlane.f32.xlu0 %v95
    %v97 = vpop.xlane.xlu0 %96
    %vm98 = vcmp.gt.f32.partialorder %v71, %v67
    %vm99 = vcmp.gt.f32.partialorder %v76, %v67
    %vm100 = vcmp.eq.f32.partialorder %v71, %v67
    %vm101 = vcmp.eq.f32.partialorder %v76, %v67
    %vm102 = vcmp.lt.s32.totalorder %v19, %v22
    %vm103 = vcmp.lt.s32.totalorder %v20, %v22
    %vm104 = vmand %vm100, %vm102
    %vm105 = vmand %vm101, %vm103
    %vm106 = vmor %vm98, %vm104
    %vm107 = vmor %vm99, %vm105
    %v108 = vsel %vm106, 1, 0
    %v109 = vsel %vm107, 1, 0
    %v110 = vcvt.s32.f32 %v108
    %v111 = vcvt.s32.f32 %v109
    %v112 = vsel %vm55, %v110, 0.0
    %v113 = vsel %vm55, %v111, 0.0
    %v114 = vadd.f32 %v112, %v113
    %v115 = vrot.slane %v114, 4
    %v116 = vadd.f32 %v114, %v115
    %v117 = vrot.slane %v116, 2
    %v118 = vadd.f32 %v116, %v117
    %v119 = vrot.slane %v118, 1
    %v120 = vadd.f32 %v118, %v119
    %v121 = vmul.f32 %v14, 10.0
    %v122 = vmul.f32 %v15, 10.0
    %v123 = vmul.f32 %v12, 10.0
    %vm124 = vcmp.lt.f32.partialorder %v120, %v23
    %vm125 = vcmp.lt.f32.partialorder %v120, %v24
    %v126 = vlaneseq
    %v127 = vshrl.u32 %v126, 7
    %v128 = vsub.s32 0, %v127
    %v129 = vrot.slane %v123, %v128
    %v130 = vsel %vm124, %v129, 0.0
    %v131 = vsel %vm125, %v129, 0.0
    %v132 = vsel %vm55, %v130, 0.0
    %133 = vadd.xlane.f32.xlu0 %v132
    %v134 = vpop.xlane.xlu0 %133
    %v135 = vsel %vm55, %v131, 0.0
    %136 = vadd.xlane.f32.xlu0 %v135
    %v137 = vpop.xlane.xlu0 %136
    %v138 = vmul.f32 %v23, 16.0
    %v139 = vmul.f32 %v24, 16.0
    %v140 = vmul.f32 %v23, 0.5
    %v141 = vmul.f32 %v24, 0.5
    %v142 = vsub.f32 %v23, 1.0
    %v143 = vsub.f32 %v24, 1.0
    %v144 = vmul.f32 %v140, %v142
    %v145 = vmul.f32 %v141, %v143
    %v146 = vsub.f32 %v138, %v144
    %v147 = vsub.f32 %v139, %v145
    %v148 = vsub.f32 %v134, %v146
    %v149 = vsub.f32 %v137, %v147
    %vm150 = vcmp.le.f32.partialorder %v94, 15.0
    %vm151 = vcmp.le.f32.partialorder %v97, 15.0
    %v152 = vsel %vm150, %v121, 0.0
    %v153 = vsel %vm151, %v122, 0.0
    %vm154 = vcmask 7168
    %v155 = vsel %vm154, %v152, 0.0
    %v156 = vsel %vm154, %v153, 0.0
    %v157 = vadd.f32 %v155, %v156
    %v158 = vrot.slane %v157, 4
    %v159 = vadd.f32 %v157, %v158
    %v160 = vrot.slane %v159, 2
    %v161 = vadd.f32 %v159, %v160
    %v162 = vrot.slane %v161, 1
    %v163 = vadd.f32 %v161, %v162
    %v164 = vsub.f32 %v163, 136.0
    %v165 = vsub.f32 15.0, %v23
    %v166 = vsub.f32 15.0, %v24
    %v167 = vadd.f32 %v165, 1.0
    %v168 = vadd.f32 %v166, 1.0
    %v169 = vmax.f32 %v167, 1.0
    %v170 = vmax.f32 %v168, 1.0
    %vm171 = vcmp.le.s32.totalorder %v19, 15
    %vm172 = vcmp.le.s32.totalorder %v20, 15
    %v173 = vsub.f32 %v164, %v148
    %v174 = vsub.f32 %v164, %v149
    %v175 = vrcp.pop %v169
    %v176 = vmul.f32 %v173, %v175
    %v177 = vrcp.pop %v170
    %v178 = vmul.f32 %v174, %v177
    %v179 = vsel %vm171, %v176, -inf
    %v180 = vsel %vm172, %v178, -inf
    %v181 = vsel %vm171, %v176, inf
    %v182 = vsel %vm172, %v178, inf
    %v183 = vsel %vm154, %v181, inf
    %v184 = vsel %vm154, %v182, inf
    %v185 = vmin.f32 %v183, %v184
    %v186 = vrot.slane %v185, 4
    %v187 = vmin.f32 %v185, %v186
    %v188 = vrot.slane %v187, 2
    %v189 = vmin.f32 %v187, %v188
    %v190 = vrot.slane %v189, 1
    %v191 = vmin.f32 %v189, %v190
    %vm192 = vcmp.eq.f32.partialorder %v94, 15.0
    %vm193 = vcmp.eq.f32.partialorder %v97, 15.0
    %v194 = vsel %vm192, %v191, 0.0
    %v195 = vsel %vm193, %v191, 0.0
    %vm196 = vcmp.le.f32.partialorder %v94, 14.0
    %vm197 = vcmp.le.f32.partialorder %v97, 14.0
    %v198 = vsel %vm196, %v121, 0.0
    %v199 = vsel %vm197, %v122, 0.0
    %v200 = vsel %vm154, %v198, 0.0
    %v201 = vsel %vm154, %v199, 0.0
    %v202 = vadd.f32 %v200, %v201
    %v203 = vrot.slane %v202, 4
    %v204 = vadd.f32 %v202, %v203
    %v205 = vrot.slane %v204, 2
    %v206 = vadd.f32 %v204, %v205
    %v207 = vrot.slane %v206, 1
    %v208 = vadd.f32 %v206, %v207
    %v209 = vsub.f32 %v208, 135.0
    %v210 = vsub.f32 14.0, %v23
    %v211 = vsub.f32 14.0, %v24
    %v212 = vadd.f32 %v210, 1.0
    %v213 = vadd.f32 %v211, 1.0
    %v214 = vmax.f32 %v212, 1.0
    %v215 = vmax.f32 %v213, 1.0
    %vm216 = vcmp.le.s32.totalorder %v19, 14
    %vm217 = vcmp.le.s32.totalorder %v20, 14
    %v218 = vsub.f32 %v209, %v148
    %v219 = vsub.f32 %v209, %v149
    %v220 = vrcp.pop %v214
    %v221 = vmul.f32 %v218, %v220
    %v222 = vrcp.pop %v215
    %v223 = vmul.f32 %v219, %v222
    %v224 = vsel %vm216, %v221, -inf
    %v225 = vsel %vm217, %v223, -inf
    %v226 = vmax.f32 %v179, %v224
    %v227 = vmax.f32 %v180, %v225
    %v228 = vsel %vm216, %v226, inf
    %v229 = vsel %vm217, %v227, inf
    %v230 = vsel %vm154, %v228, inf
    %v231 = vsel %vm154, %v229, inf
    %v232 = vmin.f32 %v230, %v231
    %v233 = vrot.slane %v232, 4
    %v234 = vmin.f32 %v232, %v233
    %v235 = vrot.slane %v234, 2
    %v236 = vmin.f32 %v234, %v235
    %v237 = vrot.slane %v236, 1
    %v238 = vmin.f32 %v236, %v237
    %vm239 = vcmp.eq.f32.partialorder %v94, 14.0
    %vm240 = vcmp.eq.f32.partialorder %v97, 14.0
    %v241 = vsel %vm239, %v238, %v194
    %v242 = vsel %vm240, %v238, %v195
    %vm243 = vcmp.le.f32.partialorder %v94, 13.0
    %vm244 = vcmp.le.f32.partialorder %v97, 13.0
    %v245 = vsel %vm243, %v121, 0.0
    %v246 = vsel %vm244, %v122, 0.0
    %v247 = vsel %vm154, %v245, 0.0
    %v248 = vsel %vm154, %v246, 0.0
    %v249 = vadd.f32 %v247, %v248
    %v250 = vrot.slane %v249, 4
    %v251 = vadd.f32 %v249, %v250
    %v252 = vrot.slane %v251, 2
    %v253 = vadd.f32 %v251, %v252
    %v254 = vrot.slane %v253, 1
    %v255 = vadd.f32 %v253, %v254
    %v256 = vsub.f32 %v255, 133.0
    %v257 = vsub.f32 13.0, %v23
    %v258 = vsub.f32 13.0, %v24
    %v259 = vadd.f32 %v257, 1.0
    %v260 = vadd.f32 %v258, 1.0
    %v261 = vmax.f32 %v259, 1.0
    %v262 = vmax.f32 %v260, 1.0
    %vm263 = vcmp.le.s32.totalorder %v19, 13
    %vm264 = vcmp.le.s32.totalorder %v20, 13
    %v265 = vsub.f32 %v256, %v148
    %v266 = vsub.f32 %v256, %v149
    %v267 = vrcp.pop %v261
    %v268 = vmul.f32 %v265, %v267
    %v269 = vrcp.pop %v262
    %v270 = vmul.f32 %v266, %v269
    %v271 = vsel %vm263, %v268, -inf
    %v272 = vsel %vm264, %v270, -inf
    %v273 = vmax.f32 %v226, %v271
    %v274 = vmax.f32 %v227, %v272
    %v275 = vsel %vm263, %v273, inf
    %v276 = vsel %vm264, %v274, inf
    %v277 = vsel %vm154, %v275, inf
    %v278 = vsel %vm154, %v276, inf
    %v279 = vmin.f32 %v277, %v278
    %v280 = vrot.slane %v279, 4
    %v281 = vmin.f32 %v279, %v280
    %v282 = vrot.slane %v281, 2
    %v283 = vmin.f32 %v281, %v282
    %v284 = vrot.slane %v283, 1
    %v285 = vmin.f32 %v283, %v284
    %vm286 = vcmp.eq.f32.partialorder %v94, 13.0
    %vm287 = vcmp.eq.f32.partialorder %v97, 13.0
    %v288 = vsel %vm286, %v285, %v241
    %v289 = vsel %vm287, %v285, %v242
    %vm290 = vcmp.le.f32.partialorder %v94, 12.0
    %vm291 = vcmp.le.f32.partialorder %v97, 12.0
    %v292 = vsel %vm290, %v121, 0.0
    %v293 = vsel %vm291, %v122, 0.0
    %v294 = vsel %vm154, %v292, 0.0
    %v295 = vsel %vm154, %v293, 0.0
    %v296 = vadd.f32 %v294, %v295
    %v297 = vrot.slane %v296, 4
    %v298 = vadd.f32 %v296, %v297
    %v299 = vrot.slane %v298, 2
    %v300 = vadd.f32 %v298, %v299
    %v301 = vrot.slane %v300, 1
    %v302 = vadd.f32 %v300, %v301
    %v303 = vsub.f32 %v302, 130.0
    %v304 = vsub.f32 12.0, %v23
    %v305 = vsub.f32 12.0, %v24
    %v306 = vadd.f32 %v304, 1.0
    %v307 = vadd.f32 %v305, 1.0
    %v308 = vmax.f32 %v306, 1.0
    %v309 = vmax.f32 %v307, 1.0
    %vm310 = vcmp.le.s32.totalorder %v19, 12
    %vm311 = vcmp.le.s32.totalorder %v20, 12
    %v312 = vsub.f32 %v303, %v148
    %v313 = vsub.f32 %v303, %v149
    %v314 = vrcp.pop %v308
    %v315 = vmul.f32 %v312, %v314
    %v316 = vrcp.pop %v309
    %v317 = vmul.f32 %v313, %v316
    %v318 = vsel %vm310, %v315, -inf
    %v319 = vsel %vm311, %v317, -inf
    %v320 = vmax.f32 %v273, %v318
    %v321 = vmax.f32 %v274, %v319
    %v322 = vsel %vm310, %v320, inf
    %v323 = vsel %vm311, %v321, inf
    %v324 = vsel %vm154, %v322, inf
    %v325 = vsel %vm154, %v323, inf
    %v326 = vmin.f32 %v324, %v325
    %v327 = vrot.slane %v326, 4
    %v328 = vmin.f32 %v326, %v327
    %v329 = vrot.slane %v328, 2
    %v330 = vmin.f32 %v328, %v329
    %v331 = vrot.slane %v330, 1
    %v332 = vmin.f32 %v330, %v331
    %vm333 = vcmp.eq.f32.partialorder %v94, 12.0
    %vm334 = vcmp.eq.f32.partialorder %v97, 12.0
    %v335 = vsel %vm333, %v332, %v288
    %v336 = vsel %vm334, %v332, %v289
    %vm337 = vcmp.le.f32.partialorder %v94, 11.0
    %vm338 = vcmp.le.f32.partialorder %v97, 11.0
    %v339 = vsel %vm337, %v121, 0.0
    %v340 = vsel %vm338, %v122, 0.0
    %v341 = vsel %vm154, %v339, 0.0
    %v342 = vsel %vm154, %v340, 0.0
    %v343 = vadd.f32 %v341, %v342
    %v344 = vrot.slane %v343, 4
    %v345 = vadd.f32 %v343, %v344
    %v346 = vrot.slane %v345, 2
    %v347 = vadd.f32 %v345, %v346
    %v348 = vrot.slane %v347, 1
    %v349 = vadd.f32 %v347, %v348
    %v350 = vsub.f32 %v349, 126.0
    %v351 = vsub.f32 11.0, %v23
    %v352 = vsub.f32 11.0, %v24
    %v353 = vadd.f32 %v351, 1.0
    %v354 = vadd.f32 %v352, 1.0
    %v355 = vmax.f32 %v353, 1.0
    %v356 = vmax.f32 %v354, 1.0
    %vm357 = vcmp.le.s32.totalorder %v19, 11
    %vm358 = vcmp.le.s32.totalorder %v20, 11
    %v359 = vsub.f32 %v350, %v148
    %v360 = vsub.f32 %v350, %v149
    %v361 = vrcp.pop %v355
    %v362 = vmul.f32 %v359, %v361
    %v363 = vrcp.pop %v356
    %v364 = vmul.f32 %v360, %v363
    %v365 = vsel %vm357, %v362, -inf
    %v366 = vsel %vm358, %v364, -inf
    %v367 = vmax.f32 %v320, %v365
    %v368 = vmax.f32 %v321, %v366
    %v369 = vsel %vm357, %v367, inf
    %v370 = vsel %vm358, %v368, inf
    %v371 = vsel %vm154, %v369, inf
    %v372 = vsel %vm154, %v370, inf
    %v373 = vmin.f32 %v371, %v372
    %v374 = vrot.slane %v373, 4
    %v375 = vmin.f32 %v373, %v374
    %v376 = vrot.slane %v375, 2
    %v377 = vmin.f32 %v375, %v376
    %v378 = vrot.slane %v377, 1
    %v379 = vmin.f32 %v377, %v378
    %vm380 = vcmp.eq.f32.partialorder %v94, 11.0
    %vm381 = vcmp.eq.f32.partialorder %v97, 11.0
    %v382 = vsel %vm380, %v379, %v335
    %v383 = vsel %vm381, %v379, %v336
    %vm384 = vcmp.le.f32.partialorder %v94, 10.0
    %vm385 = vcmp.le.f32.partialorder %v97, 10.0
    %v386 = vsel %vm384, %v121, 0.0
    %v387 = vsel %vm385, %v122, 0.0
    %v388 = vsel %vm154, %v386, 0.0
    %v389 = vsel %vm154, %v387, 0.0
    %v390 = vadd.f32 %v388, %v389
    %v391 = vrot.slane %v390, 4
    %v392 = vadd.f32 %v390, %v391
    %v393 = vrot.slane %v392, 2
    %v394 = vadd.f32 %v392, %v393
    %v395 = vrot.slane %v394, 1
    %v396 = vadd.f32 %v394, %v395
    %v397 = vsub.f32 %v396, 121.0
    %v398 = vsub.f32 10.0, %v23
    %v399 = vsub.f32 10.0, %v24
    %v400 = vadd.f32 %v398, 1.0
    %v401 = vadd.f32 %v399, 1.0
    %v402 = vmax.f32 %v400, 1.0
    %v403 = vmax.f32 %v401, 1.0
    %vm404 = vcmp.le.s32.totalorder %v19, 10
    %vm405 = vcmp.le.s32.totalorder %v20, 10
    %v406 = vsub.f32 %v397, %v148
    %v407 = vsub.f32 %v397, %v149
    %v408 = vrcp.pop %v402
    %v409 = vmul.f32 %v406, %v408
    %v410 = vrcp.pop %v403
    %v411 = vmul.f32 %v407, %v410
    %v412 = vsel %vm404, %v409, -inf
    %v413 = vsel %vm405, %v411, -inf
    %v414 = vmax.f32 %v367, %v412
    %v415 = vmax.f32 %v368, %v413
    %v416 = vsel %vm404, %v414, inf
    %v417 = vsel %vm405, %v415, inf
    %v418 = vsel %vm154, %v416, inf
    %v419 = vsel %vm154, %v417, inf
    %v420 = vmin.f32 %v418, %v419
    %v421 = vrot.slane %v420, 4
    %v422 = vmin.f32 %v420, %v421
    %v423 = vrot.slane %v422, 2
    %v424 = vmin.f32 %v422, %v423
    %v425 = vrot.slane %v424, 1
    %v426 = vmin.f32 %v424, %v425
    %vm427 = vcmp.eq.f32.partialorder %v94, 10.0
    %vm428 = vcmp.eq.f32.partialorder %v97, 10.0
    %v429 = vsel %vm427, %v426, %v382
    %v430 = vsel %vm428, %v426, %v383
    %vm431 = vcmp.le.f32.partialorder %v94, 9.0
    %vm432 = vcmp.le.f32.partialorder %v97, 9.0
    %v433 = vsel %vm431, %v121, 0.0
    %v434 = vsel %vm432, %v122, 0.0
    %v435 = vsel %vm154, %v433, 0.0
    %v436 = vsel %vm154, %v434, 0.0
    %v437 = vadd.f32 %v435, %v436
    %v438 = vrot.slane %v437, 4
    %v439 = vadd.f32 %v437, %v438
    %v440 = vrot.slane %v439, 2
    %v441 = vadd.f32 %v439, %v440
    %v442 = vrot.slane %v441, 1
    %v443 = vadd.f32 %v441, %v442
    %v444 = vsub.f32 %v443, 115.0
    %v445 = vsub.f32 9.0, %v23
    %v446 = vsub.f32 9.0, %v24
    %v447 = vadd.f32 %v445, 1.0
    %v448 = vadd.f32 %v446, 1.0
    %v449 = vmax.f32 %v447, 1.0
    %v450 = vmax.f32 %v448, 1.0
    %vm451 = vcmp.le.s32.totalorder %v19, 9
    %vm452 = vcmp.le.s32.totalorder %v20, 9
    %v453 = vsub.f32 %v444, %v148
    %v454 = vsub.f32 %v444, %v149
    %v455 = vrcp.pop %v449
    %v456 = vmul.f32 %v453, %v455
    %v457 = vrcp.pop %v450
    %v458 = vmul.f32 %v454, %v457
    %v459 = vsel %vm451, %v456, -inf
    %v460 = vsel %vm452, %v458, -inf
    %v461 = vmax.f32 %v414, %v459
    %v462 = vmax.f32 %v415, %v460
    %v463 = vsel %vm451, %v461, inf
    %v464 = vsel %vm452, %v462, inf
    %v465 = vsel %vm154, %v463, inf
    %v466 = vsel %vm154, %v464, inf
    %v467 = vmin.f32 %v465, %v466
    %v468 = vrot.slane %v467, 4
    %v469 = vmin.f32 %v467, %v468
    %v470 = vrot.slane %v469, 2
    %v471 = vmin.f32 %v469, %v470
    %v472 = vrot.slane %v471, 1
    %v473 = vmin.f32 %v471, %v472
    %vm474 = vcmp.eq.f32.partialorder %v94, 9.0
    %vm475 = vcmp.eq.f32.partialorder %v97, 9.0
    %v476 = vsel %vm474, %v473, %v429
    %v477 = vsel %vm475, %v473, %v430
    %vm478 = vcmp.le.f32.partialorder %v94, 8.0
    %vm479 = vcmp.le.f32.partialorder %v97, 8.0
    %v480 = vsel %vm478, %v121, 0.0
    %v481 = vsel %vm479, %v122, 0.0
    %v482 = vsel %vm154, %v480, 0.0
    %v483 = vsel %vm154, %v481, 0.0
    %v484 = vadd.f32 %v482, %v483
    %v485 = vrot.slane %v484, 4
    %v486 = vadd.f32 %v484, %v485
    %v487 = vrot.slane %v486, 2
    %v488 = vadd.f32 %v486, %v487
    %v489 = vrot.slane %v488, 1
    %v490 = vadd.f32 %v488, %v489
    %v491 = vsub.f32 %v490, 108.0
    %v492 = vsub.f32 8.0, %v23
    %v493 = vsub.f32 8.0, %v24
    %v494 = vadd.f32 %v492, 1.0
    %v495 = vadd.f32 %v493, 1.0
    %v496 = vmax.f32 %v494, 1.0
    %v497 = vmax.f32 %v495, 1.0
    %vm498 = vcmp.le.s32.totalorder %v19, 8
    %vm499 = vcmp.le.s32.totalorder %v20, 8
    %v500 = vsub.f32 %v491, %v148
    %v501 = vsub.f32 %v491, %v149
    %v502 = vrcp.pop %v496
    %v503 = vmul.f32 %v500, %v502
    %v504 = vrcp.pop %v497
    %v505 = vmul.f32 %v501, %v504
    %v506 = vsel %vm498, %v503, -inf
    %v507 = vsel %vm499, %v505, -inf
    %v508 = vmax.f32 %v461, %v506
    %v509 = vmax.f32 %v462, %v507
    %v510 = vsel %vm498, %v508, inf
    %v511 = vsel %vm499, %v509, inf
    %v512 = vsel %vm154, %v510, inf
    %v513 = vsel %vm154, %v511, inf
    %v514 = vmin.f32 %v512, %v513
    %v515 = vrot.slane %v514, 4
    %v516 = vmin.f32 %v514, %v515
    %v517 = vrot.slane %v516, 2
    %v518 = vmin.f32 %v516, %v517
    %v519 = vrot.slane %v518, 1
    %v520 = vmin.f32 %v518, %v519
    %vm521 = vcmp.eq.f32.partialorder %v94, 8.0
    %vm522 = vcmp.eq.f32.partialorder %v97, 8.0
    %v523 = vsel %vm521, %v520, %v476
    %v524 = vsel %vm522, %v520, %v477
    %vm525 = vcmp.le.f32.partialorder %v94, 7.0
    %vm526 = vcmp.le.f32.partialorder %v97, 7.0
    %v527 = vsel %vm525, %v121, 0.0
    %v528 = vsel %vm526, %v122, 0.0
    %v529 = vsel %vm154, %v527, 0.0
    %v530 = vsel %vm154, %v528, 0.0
    %v531 = vadd.f32 %v529, %v530
    %v532 = vrot.slane %v531, 4
    %v533 = vadd.f32 %v531, %v532
    %v534 = vrot.slane %v533, 2
    %v535 = vadd.f32 %v533, %v534
    %v536 = vrot.slane %v535, 1
    %v537 = vadd.f32 %v535, %v536
    %v538 = vsub.f32 %v537, 100.0
    %v539 = vsub.f32 7.0, %v23
    %v540 = vsub.f32 7.0, %v24
    %v541 = vadd.f32 %v539, 1.0
    %v542 = vadd.f32 %v540, 1.0
    %v543 = vmax.f32 %v541, 1.0
    %v544 = vmax.f32 %v542, 1.0
    %vm545 = vcmp.le.s32.totalorder %v19, 7
    %vm546 = vcmp.le.s32.totalorder %v20, 7
    %v547 = vsub.f32 %v538, %v148
    %v548 = vsub.f32 %v538, %v149
    %v549 = vrcp.pop %v543
    %v550 = vmul.f32 %v547, %v549
    %v551 = vrcp.pop %v544
    %v552 = vmul.f32 %v548, %v551
    %v553 = vsel %vm545, %v550, -inf
    %v554 = vsel %vm546, %v552, -inf
    %v555 = vmax.f32 %v508, %v553
    %v556 = vmax.f32 %v509, %v554
    %v557 = vsel %vm545, %v555, inf
    %v558 = vsel %vm546, %v556, inf
    %v559 = vsel %vm154, %v557, inf
    %v560 = vsel %vm154, %v558, inf
    %v561 = vmin.f32 %v559, %v560
    %v562 = vrot.slane %v561, 4
    %v563 = vmin.f32 %v561, %v562
    %v564 = vrot.slane %v563, 2
    %v565 = vmin.f32 %v563, %v564
    %v566 = vrot.slane %v565, 1
    %v567 = vmin.f32 %v565, %v566
    %vm568 = vcmp.eq.f32.partialorder %v94, 7.0
    %vm569 = vcmp.eq.f32.partialorder %v97, 7.0
    %v570 = vsel %vm568, %v567, %v523
    %v571 = vsel %vm569, %v567, %v524
    %vm572 = vcmp.le.f32.partialorder %v94, 6.0
    %vm573 = vcmp.le.f32.partialorder %v97, 6.0
    %v574 = vsel %vm572, %v121, 0.0
    %v575 = vsel %vm573, %v122, 0.0
    %v576 = vsel %vm154, %v574, 0.0
    %v577 = vsel %vm154, %v575, 0.0
    %v578 = vadd.f32 %v576, %v577
    %v579 = vrot.slane %v578, 4
    %v580 = vadd.f32 %v578, %v579
    %v581 = vrot.slane %v580, 2
    %v582 = vadd.f32 %v580, %v581
    %v583 = vrot.slane %v582, 1
    %v584 = vadd.f32 %v582, %v583
    %v585 = vsub.f32 %v584, 91.0
    %v586 = vsub.f32 6.0, %v23
    %v587 = vsub.f32 6.0, %v24
    %v588 = vadd.f32 %v586, 1.0
    %v589 = vadd.f32 %v587, 1.0
    %v590 = vmax.f32 %v588, 1.0
    %v591 = vmax.f32 %v589, 1.0
    %vm592 = vcmp.le.s32.totalorder %v19, 6
    %vm593 = vcmp.le.s32.totalorder %v20, 6
    %v594 = vsub.f32 %v585, %v148
    %v595 = vsub.f32 %v585, %v149
    %v596 = vrcp.pop %v590
    %v597 = vmul.f32 %v594, %v596
    %v598 = vrcp.pop %v591
    %v599 = vmul.f32 %v595, %v598
    %v600 = vsel %vm592, %v597, -inf
    %v601 = vsel %vm593, %v599, -inf
    %v602 = vmax.f32 %v555, %v600
    %v603 = vmax.f32 %v556, %v601
    %v604 = vsel %vm592, %v602, inf
    %v605 = vsel %vm593, %v603, inf
    %v606 = vsel %vm154, %v604, inf
    %v607 = vsel %vm154, %v605, inf
    %v608 = vmin.f32 %v606, %v607
    %v609 = vrot.slane %v608, 4
    %v610 = vmin.f32 %v608, %v609
    %v611 = vrot.slane %v610, 2
    %v612 = vmin.f32 %v610, %v611
    %v613 = vrot.slane %v612, 1
    %v614 = vmin.f32 %v612, %v613
    %vm615 = vcmp.eq.f32.partialorder %v94, 6.0
    %vm616 = vcmp.eq.f32.partialorder %v97, 6.0
    %v617 = vsel %vm615, %v614, %v570
    %v618 = vsel %vm616, %v614, %v571
    %vm619 = vcmp.le.f32.partialorder %v94, 5.0
    %vm620 = vcmp.le.f32.partialorder %v97, 5.0
    %v621 = vsel %vm619, %v121, 0.0
    %v622 = vsel %vm620, %v122, 0.0
    %v623 = vsel %vm154, %v621, 0.0
    %v624 = vsel %vm154, %v622, 0.0
    %v625 = vadd.f32 %v623, %v624
    %v626 = vrot.slane %v625, 4
    %v627 = vadd.f32 %v625, %v626
    %v628 = vrot.slane %v627, 2
    %v629 = vadd.f32 %v627, %v628
    %v630 = vrot.slane %v629, 1
    %v631 = vadd.f32 %v629, %v630
    %v632 = vsub.f32 %v631, 81.0
    %v633 = vsub.f32 5.0, %v23
    %v634 = vsub.f32 5.0, %v24
    %v635 = vadd.f32 %v633, 1.0
    %v636 = vadd.f32 %v634, 1.0
    %v637 = vmax.f32 %v635, 1.0
    %v638 = vmax.f32 %v636, 1.0
    %vm639 = vcmp.le.s32.totalorder %v19, 5
    %vm640 = vcmp.le.s32.totalorder %v20, 5
    %v641 = vsub.f32 %v632, %v148
    %v642 = vsub.f32 %v632, %v149
    %v643 = vrcp.pop %v637
    %v644 = vmul.f32 %v641, %v643
    %v645 = vrcp.pop %v638
    %v646 = vmul.f32 %v642, %v645
    %v647 = vsel %vm639, %v644, -inf
    %v648 = vsel %vm640, %v646, -inf
    %v649 = vmax.f32 %v602, %v647
    %v650 = vmax.f32 %v603, %v648
    %v651 = vsel %vm639, %v649, inf
    %v652 = vsel %vm640, %v650, inf
    %v653 = vsel %vm154, %v651, inf
    %v654 = vsel %vm154, %v652, inf
    %v655 = vmin.f32 %v653, %v654
    %v656 = vrot.slane %v655, 4
    %v657 = vmin.f32 %v655, %v656
    %v658 = vrot.slane %v657, 2
    %v659 = vmin.f32 %v657, %v658
    %v660 = vrot.slane %v659, 1
    %v661 = vmin.f32 %v659, %v660
    %vm662 = vcmp.eq.f32.partialorder %v94, 5.0
    %vm663 = vcmp.eq.f32.partialorder %v97, 5.0
    %v664 = vsel %vm662, %v661, %v617
    %v665 = vsel %vm663, %v661, %v618
    %vm666 = vcmp.le.f32.partialorder %v94, 4.0
    %vm667 = vcmp.le.f32.partialorder %v97, 4.0
    %v668 = vsel %vm666, %v121, 0.0
    %v669 = vsel %vm667, %v122, 0.0
    %v670 = vsel %vm154, %v668, 0.0
    %v671 = vsel %vm154, %v669, 0.0
    %v672 = vadd.f32 %v670, %v671
    %v673 = vrot.slane %v672, 4
    %v674 = vadd.f32 %v672, %v673
    %v675 = vrot.slane %v674, 2
    %v676 = vadd.f32 %v674, %v675
    %v677 = vrot.slane %v676, 1
    %v678 = vadd.f32 %v676, %v677
    %v679 = vsub.f32 %v678, 70.0
    %v680 = vsub.f32 4.0, %v23
    %v681 = vsub.f32 4.0, %v24
    %v682 = vadd.f32 %v680, 1.0
    %v683 = vadd.f32 %v681, 1.0
    %v684 = vmax.f32 %v682, 1.0
    %v685 = vmax.f32 %v683, 1.0
    %vm686 = vcmp.le.s32.totalorder %v19, 4
    %vm687 = vcmp.le.s32.totalorder %v20, 4
    %v688 = vsub.f32 %v679, %v148
    %v689 = vsub.f32 %v679, %v149
    %v690 = vrcp.pop %v684
    %v691 = vmul.f32 %v688, %v690
    %v692 = vrcp.pop %v685
    %v693 = vmul.f32 %v689, %v692
    %v694 = vsel %vm686, %v691, -inf
    %v695 = vsel %vm687, %v693, -inf
    %v696 = vmax.f32 %v649, %v694
    %v697 = vmax.f32 %v650, %v695
    %v698 = vsel %vm686, %v696, inf
    %v699 = vsel %vm687, %v697, inf
    %v700 = vsel %vm154, %v698, inf
    %v701 = vsel %vm154, %v699, inf
    %v702 = vmin.f32 %v700, %v701
    %v703 = vrot.slane %v702, 4
    %v704 = vmin.f32 %v702, %v703
    %v705 = vrot.slane %v704, 2
    %v706 = vmin.f32 %v704, %v705
    %v707 = vrot.slane %v706, 1
    %v708 = vmin.f32 %v706, %v707
    %vm709 = vcmp.eq.f32.partialorder %v94, 4.0
    %vm710 = vcmp.eq.f32.partialorder %v97, 4.0
    %v711 = vsel %vm709, %v708, %v664
    %v712 = vsel %vm710, %v708, %v665
    %vm713 = vcmp.le.f32.partialorder %v94, 3.0
    %vm714 = vcmp.le.f32.partialorder %v97, 3.0
    %v715 = vsel %vm713, %v121, 0.0
    %v716 = vsel %vm714, %v122, 0.0
    %v717 = vsel %vm154, %v715, 0.0
    %v718 = vsel %vm154, %v716, 0.0
    %v719 = vadd.f32 %v717, %v718
    %v720 = vrot.slane %v719, 4
    %v721 = vadd.f32 %v719, %v720
    %v722 = vrot.slane %v721, 2
    %v723 = vadd.f32 %v721, %v722
    %v724 = vrot.slane %v723, 1
    %v725 = vadd.f32 %v723, %v724
    %v726 = vsub.f32 %v725, 58.0
    %v727 = vsub.f32 3.0, %v23
    %v728 = vsub.f32 3.0, %v24
    %v729 = vadd.f32 %v727, 1.0
    %v730 = vadd.f32 %v728, 1.0
    %v731 = vmax.f32 %v729, 1.0
    %v732 = vmax.f32 %v730, 1.0
    %vm733 = vcmp.le.s32.totalorder %v19, 3
    %vm734 = vcmp.le.s32.totalorder %v20, 3
    %v735 = vsub.f32 %v726, %v148
    %v736 = vsub.f32 %v726, %v149
    %v737 = vrcp.pop %v731
    %v738 = vmul.f32 %v735, %v737
    %v739 = vrcp.pop %v732
    %v740 = vmul.f32 %v736, %v739
    %v741 = vsel %vm733, %v738, -inf
    %v742 = vsel %vm734, %v740, -inf
    %v743 = vmax.f32 %v696, %v741
    %v744 = vmax.f32 %v697, %v742
    %v745 = vsel %vm733, %v743, inf
    %v746 = vsel %vm734, %v744, inf
    %v747 = vsel %vm154, %v745, inf
    %v748 = vsel %vm154, %v746, inf
    %v749 = vmin.f32 %v747, %v748
    %v750 = vrot.slane %v749, 4
    %v751 = vmin.f32 %v749, %v750
    %v752 = vrot.slane %v751, 2
    %v753 = vmin.f32 %v751, %v752
    %v754 = vrot.slane %v753, 1
    %v755 = vmin.f32 %v753, %v754
    %vm756 = vcmp.eq.f32.partialorder %v94, 3.0
    %vm757 = vcmp.eq.f32.partialorder %v97, 3.0
    %v758 = vsel %vm756, %v755, %v711
    %v759 = vsel %vm757, %v755, %v712
    %vm760 = vcmp.le.f32.partialorder %v94, 2.0
    %vm761 = vcmp.le.f32.partialorder %v97, 2.0
    %v762 = vsel %vm760, %v121, 0.0
    %v763 = vsel %vm761, %v122, 0.0
    %v764 = vsel %vm154, %v762, 0.0
    %v765 = vsel %vm154, %v763, 0.0
    %v766 = vadd.f32 %v764, %v765
    %v767 = vrot.slane %v766, 4
    %v768 = vadd.f32 %v766, %v767
    %v769 = vrot.slane %v768, 2
    %v770 = vadd.f32 %v768, %v769
    %v771 = vrot.slane %v770, 1
    %v772 = vadd.f32 %v770, %v771
    %v773 = vsub.f32 %v772, 45.0
    %v774 = vsub.f32 2.0, %v23
    %v775 = vsub.f32 2.0, %v24
    %v776 = vadd.f32 %v774, 1.0
    %v777 = vadd.f32 %v775, 1.0
    %v778 = vmax.f32 %v776, 1.0
    %v779 = vmax.f32 %v777, 1.0
    %vm780 = vcmp.le.s32.totalorder %v19, 2
    %vm781 = vcmp.le.s32.totalorder %v20, 2
    %v782 = vsub.f32 %v773, %v148
    %v783 = vsub.f32 %v773, %v149
    %v784 = vrcp.pop %v778
    %v785 = vmul.f32 %v782, %v784
    %v786 = vrcp.pop %v779
    %v787 = vmul.f32 %v783, %v786
    %v788 = vsel %vm780, %v785, -inf
    %v789 = vsel %vm781, %v787, -inf
    %v790 = vmax.f32 %v743, %v788
    %v791 = vmax.f32 %v744, %v789
    %v792 = vsel %vm780, %v790, inf
    %v793 = vsel %vm781, %v791, inf
    %v794 = vsel %vm154, %v792, inf
    %v795 = vsel %vm154, %v793, inf
    %v796 = vmin.f32 %v794, %v795
    %v797 = vrot.slane %v796, 4
    %v798 = vmin.f32 %v796, %v797
    %v799 = vrot.slane %v798, 2
    %v800 = vmin.f32 %v798, %v799
    %v801 = vrot.slane %v800, 1
    %v802 = vmin.f32 %v800, %v801
    %vm803 = vcmp.eq.f32.partialorder %v94, 2.0
    %vm804 = vcmp.eq.f32.partialorder %v97, 2.0
    %v805 = vsel %vm803, %v802, %v758
    %v806 = vsel %vm804, %v802, %v759
    %vm807 = vcmp.le.f32.partialorder %v94, 1.0
    %vm808 = vcmp.le.f32.partialorder %v97, 1.0
    %v809 = vsel %vm807, %v121, 0.0
    %v810 = vsel %vm808, %v122, 0.0
    %v811 = vsel %vm154, %v809, 0.0
    %v812 = vsel %vm154, %v810, 0.0
    %v813 = vadd.f32 %v811, %v812
    %v814 = vrot.slane %v813, 4
    %v815 = vadd.f32 %v813, %v814
    %v816 = vrot.slane %v815, 2
    %v817 = vadd.f32 %v815, %v816
    %v818 = vrot.slane %v817, 1
    %v819 = vadd.f32 %v817, %v818
    %v820 = vsub.f32 %v819, 31.0
    %v821 = vsub.f32 1.0, %v23
    %v822 = vsub.f32 1.0, %v24
    %v823 = vadd.f32 %v821, 1.0
    %v824 = vadd.f32 %v822, 1.0
    %v825 = vmax.f32 %v823, 1.0
    %v826 = vmax.f32 %v824, 1.0
    %vm827 = vcmp.le.s32.totalorder %v19, 1
    %vm828 = vcmp.le.s32.totalorder %v20, 1
    %v829 = vsub.f32 %v820, %v148
    %v830 = vsub.f32 %v820, %v149
    %v831 = vrcp.pop %v825
    %v832 = vmul.f32 %v829, %v831
    %v833 = vrcp.pop %v826
    %v834 = vmul.f32 %v830, %v833
    %v835 = vsel %vm827, %v832, -inf
    %v836 = vsel %vm828, %v834, -inf
    %v837 = vmax.f32 %v790, %v835
    %v838 = vmax.f32 %v791, %v836
    %v839 = vsel %vm827, %v837, inf
    %v840 = vsel %vm828, %v838, inf
    %v841 = vsel %vm154, %v839, inf
    %v842 = vsel %vm154, %v840, inf
    %v843 = vmin.f32 %v841, %v842
    %v844 = vrot.slane %v843, 4
    %v845 = vmin.f32 %v843, %v844
    %v846 = vrot.slane %v845, 2
    %v847 = vmin.f32 %v845, %v846
    %v848 = vrot.slane %v847, 1
    %v849 = vmin.f32 %v847, %v848
    %vm850 = vcmp.eq.f32.partialorder %v94, 1.0
    %vm851 = vcmp.eq.f32.partialorder %v97, 1.0
    %v852 = vsel %vm850, %v849, %v805
    %v853 = vsel %vm851, %v849, %v806
    %vm854 = vcmp.le.f32.partialorder %v94, 0.0
    %vm855 = vcmp.le.f32.partialorder %v97, 0.0
    %v856 = vsel %vm854, %v121, 0.0
    %v857 = vsel %vm855, %v122, 0.0
    %v858 = vsel %vm154, %v856, 0.0
    %v859 = vsel %vm154, %v857, 0.0
    %v860 = vadd.f32 %v858, %v859
    %v861 = vrot.slane %v860, 4
    %v862 = vadd.f32 %v860, %v861
    %v863 = vrot.slane %v862, 2
    %v864 = vadd.f32 %v862, %v863
    %v865 = vrot.slane %v864, 1
    %v866 = vadd.f32 %v864, %v865
    %v867 = vsub.f32 %v866, 16.0
    %v868 = vsub.f32 0.0, %v23
    %v869 = vsub.f32 0.0, %v24
    %v870 = vadd.f32 %v868, 1.0
    %v871 = vadd.f32 %v869, 1.0
    %v872 = vmax.f32 %v870, 1.0
    %v873 = vmax.f32 %v871, 1.0
    %vm874 = vcmp.le.s32.totalorder %v19, 0
    %vm875 = vcmp.le.s32.totalorder %v20, 0
    %v876 = vsub.f32 %v867, %v148
    %v877 = vsub.f32 %v867, %v149
    %v878 = vrcp.pop %v872
    %v879 = vmul.f32 %v876, %v878
    %v880 = vrcp.pop %v873
    %v881 = vmul.f32 %v877, %v880
    %v882 = vsel %vm874, %v879, -inf
    %v883 = vsel %vm875, %v881, -inf
    %v884 = vmax.f32 %v837, %v882
    %v885 = vmax.f32 %v838, %v883
    %v886 = vsel %vm874, %v884, inf
    %v887 = vsel %vm875, %v885, inf
    %v888 = vsel %vm154, %v886, inf
    %v889 = vsel %vm154, %v887, inf
    %v890 = vmin.f32 %v888, %v889
    %v891 = vrot.slane %v890, 4
    %v892 = vmin.f32 %v890, %v891
    %v893 = vrot.slane %v892, 2
    %v894 = vmin.f32 %v892, %v893
    %v895 = vrot.slane %v894, 1
    %v896 = vmin.f32 %v894, %v895
    %vm897 = vcmp.eq.f32.partialorder %v94, 0.0
    %vm898 = vcmp.eq.f32.partialorder %v97, 0.0
    %v899 = vsel %vm897, %v896, %v852
    %v900 = vsel %vm898, %v896, %v853
    %v901 = vsub.f32 %v121, %v899
    %v902 = vsub.f32 %v122, %v900
    %v903 = vsel %vm154, %v901, 0.0
    %v904 = vsel %vm154, %v902, 0.0
    %v905 = vadd.f32 %v903, %v904
    %v906 = vrot.slane %v905, 4
    %v907 = vadd.f32 %v905, %v906
    %v908 = vrot.slane %v907, 2
    %v909 = vadd.f32 %v907, %v908
    %v910 = vrot.slane %v909, 1
    %v911 = vadd.f32 %v909, %v910
    %v912 = vmul.f32 %v911, 0.0625
    %v913 = vsub.f32 %v901, %v912
    %v914 = vsub.f32 %v902, %v912
    %v915 = vadd.f32 %v62, %v63
    %v916 = vrot.slane %v915, 4
    %v917 = vadd.f32 %v915, %v916
    %v918 = vrot.slane %v917, 2
    %v919 = vadd.f32 %v917, %v918
    %v920 = vrot.slane %v919, 1
    %v921 = vadd.f32 %v919, %v920
    %v922 = vmul.f32 %v921, 0.0625
    %v923 = vsub.f32 %v62, %v922
    %v924 = vsub.f32 %v63, %v922
    %v925 = vmul.f32 %v913, %v923
    %v926 = vmul.f32 %v914, %v924
    %v927 = vsel %vm154, %v925, 0.0
    %v928 = vsel %vm154, %v926, 0.0
    %v929 = vadd.f32 %v927, %v928
    %v930 = vrot.slane %v929, 4
    %v931 = vadd.f32 %v929, %v930
    %v932 = vrot.slane %v931, 2
    %v933 = vadd.f32 %v931, %v932
    %v934 = vrot.slane %v933, 1
    %v935 = vadd.f32 %v933, %v934
    %v936 = vmul.f32 %v913, %v913
    %v937 = vmul.f32 %v914, %v914
    %v938 = vsel %vm154, %v936, 0.0
    %v939 = vsel %vm154, %v937, 0.0
    %v940 = vadd.f32 %v938, %v939
    %v941 = vrot.slane %v940, 4
    %v942 = vadd.f32 %v940, %v941
    %v943 = vrot.slane %v942, 2
    %v944 = vadd.f32 %v942, %v943
    %v945 = vrot.slane %v944, 1
    %v946 = vadd.f32 %v944, %v945
    %v947 = vmul.f32 %v923, %v923
    %v948 = vmul.f32 %v924, %v924
    %v949 = vadd.f32 %v947, %v948
    %v950 = vrot.slane %v949, 4
    %v951 = vadd.f32 %v949, %v950
    %v952 = vrot.slane %v951, 2
    %v953 = vadd.f32 %v951, %v952
    %v954 = vrot.slane %v953, 1
    %v955 = vadd.f32 %v953, %v954
    %v956 = vmul.f32 %v946, %v955
    %v957 = vadd.f32 %v956, 1e-30
    %v958 = vrsqrt.pop %v957
    %v959 = vmul.f32 %v935, %v958
    %v960 = vsub.f32 1.0, %v959
    %vm961 = vcmask 0
    %962 = vst.msk [vmem:[#allocation2] sm:$0x1] %vm961, %v960
    // Predicated region
    $region10: #{tpu_custom_call.1} parent=1 // pred_check
      _
    $region11: #{tpu_custom_call.1} parent=1 // pred_check_branch
      %964 = sbr.rel (0) target = $region13
    $region12: #{tpu_custom_call.1} parent=1 // pred_region
      %s966 = ssub.s32 16, 16
      %967 = vsyncadd [#allocation3], %s966
      %s969 = sshll.u32 [#allocation2], 4
      %s970 = int_to_ptr.vmem [resolvable:$true] %s969
      %972 = dma.vmem_to_hbm [thread:$0]  %s970, 16, %s2, [#allocation3]
    $region13: #{tpu_custom_call.1} parent=1 // pred_fallthru
      _
    // Predicated region
    $region14: #{tpu_custom_call.1} parent=1 // pred_check
      _
    $region15: #{tpu_custom_call.1} parent=1 // pred_check_branch
      %974 = sbr.rel (0) target = $region17
    $region16: #{tpu_custom_call.1} parent=1 // pred_region
      %975 = dma.done [#allocation3], 16
    $region17: #{tpu_custom_call.1} parent=1 // pred_fallthru
      _
    %976 = vsyncpa [#allocation3], 1

</llo_original>
